<compile_context>
chip_gen: v7x
topology: tpu7x:2x2x1
jax: 0.10.0
libtpu: 0.0.40
codegen_flags: <defaults>
</compile_context>

<pallas_src>
import functools

import jax
import jax.numpy as jnp
from jax.experimental import pallas as pl
from jax.experimental.pallas import tpu as pltpu


def make_vae_kernel(n_enc_hidden: int, n_dec_hidden: int,
                    latent_dim: int, input_dim: int):
    """Fused VAE forward kernel for one batch tile (weights resident in VMEM)."""

    def kernel(*refs):
        it = iter(refs)
        x_ref, y_ref, eps_ref = next(it), next(it), next(it)

        enc_layers = [(next(it), next(it)) for _ in range(n_enc_hidden)]
        w_lat, b_lat = next(it), next(it)                # fused [mu | log_var] head
        w_z, w_y, b_d0 = next(it), next(it), next(it)    # first decoder layer, row-split
        dec_layers = [(next(it), next(it)) for _ in range(n_dec_hidden - 1)]
        w_out, b_out = next(it), next(it)

        out_ref = next(it)                               # [x_recon | mu | log_var]

        def mm(a_f32, w_ref):
            # bf16 MXU inputs, f32 accumulation.
            return jnp.dot(a_f32.astype(jnp.bfloat16), w_ref[...],
                           preferred_element_type=jnp.float32)

        # ---------------- encoder ----------------
        h = x_ref[...]
        for w, b in enc_layers:
            h = jnp.maximum(mm(h, w) + b[...], 0.0)

        # Fused latent head: one matmul produces [mu | log_var].
        lat = mm(h, w_lat) + b_lat[...]
        # Write latent columns early; this narrow store hides under decoder MXU work.
        out_ref[:, pl.ds(input_dim, 2 * latent_dim)] = lat
        mu = lat[:, :latent_dim]
        lv = lat[:, latent_dim:]

        # ---------------- reparameterize (f32 elementwise, exp on EUP) ----------------
        z = mu + eps_ref[...] * jnp.exp(0.5 * lv)

        # -------- decoder: concat(z, y) @ W0 == z @ W_z + y @ W_y --------
        h = jnp.maximum(mm(z, w_z) + mm(y_ref[...], w_y) + b_d0[...], 0.0)
        for w, b in dec_layers:
            h = jnp.maximum(mm(h, w) + b[...], 0.0)
        out_ref[:, pl.ds(0, input_dim)] = mm(h, w_out) + b_out[...]

    return kernel


def init_params(key, input_dim, latent_dim, momenta_dim, hidden_dims):
    """PyTorch-Linear init U(-1/sqrt(fan_in)); weights stored bf16, biases f32."""

    def linear(key, fan_in, fan_out):
        kw, kb = jax.random.split(key)
        bound = 1.0 / (fan_in ** 0.5)
        w = jax.random.uniform(kw, (fan_in, fan_out), jnp.float32, -bound, bound)
        b = jax.random.uniform(kb, (1, fan_out), jnp.float32, -bound, bound)
        return w.astype(jnp.bfloat16), b

    n_linear = 2 * len(hidden_dims) + 2   # enc hiddens + lat head + dec layers + out
    keys = iter(jax.random.split(key, n_linear))
    params = {}

    enc, in_f = [], input_dim
    for h in hidden_dims:
        enc.append(linear(next(keys), in_f, h))
        in_f = h
    params["enc"] = enc

    # Fused final encoder layer -> latent_dim * 2 ([mu | log_var]); kept whole.
    params["w_lat"], params["b_lat"] = linear(next(keys), in_f, latent_dim * 2)

    # Decoder over reversed hidden dims; first layer weight split by rows
    # (z-rows / y-rows) to realize the concat.
    dec_dims = hidden_dims[::-1]
    w0, b0 = linear(next(keys), latent_dim + momenta_dim, dec_dims[0])
    params["w_z"], params["w_y"], params["b_d0"] = w0[:latent_dim], w0[latent_dim:], b0

    dec, in_f = [], dec_dims[0]
    for h in dec_dims[1:]:
        dec.append(linear(next(keys), in_f, h))
        in_f = h
    params["dec"] = dec
    params["w_out"], params["b_out"] = linear(next(keys), in_f, input_dim)
    return params


def flatten_params(params):
    flat = []
    for w, b in params["enc"]:
        flat += [w, b]
    flat += [params["w_lat"], params["b_lat"]]
    flat += [params["w_z"], params["w_y"], params["b_d0"]]
    for w, b in params["dec"]:
        flat += [w, b]
    flat += [params["w_out"], params["b_out"]]
    return flat


@functools.partial(
    jax.jit,
    static_argnames=("n_enc_hidden", "n_dec_hidden", "latent_dim", "tile_b"))
def autoencoder_forward(x, y, eps, flat_params, *, n_enc_hidden, n_dec_hidden,
                        latent_dim, tile_b=256):
    B, input_dim = x.shape
    momenta_dim = y.shape[1]
    out_dim = input_dim + 2 * latent_dim

    # Batch tile: multiple of 8 sublanes; >=256 rows fills MXU rows on v6e/v7x.
    tile_b = min(tile_b, B)
    assert B % tile_b == 0 and tile_b % 8 == 0, "batch must tile into multiples of 8"
    grid = (B // tile_b,)

    kernel = make_vae_kernel(n_enc_hidden, n_dec_hidden, latent_dim, input_dim)
    inputs = [x, y, eps] + list(flat_params)

    def batch_spec(feat):
        return pl.BlockSpec((tile_b, feat), lambda i: (i, 0))

    in_specs = [batch_spec(input_dim), batch_spec(momenta_dim), batch_spec(latent_dim)]
    # Weights / biases: full block, constant index_map -> resident across grid steps.
    in_specs += [pl.BlockSpec(p.shape, lambda i: (0, 0)) for p in flat_params]
    out_specs = batch_spec(out_dim)
    out_shape = jax.ShapeDtypeStruct((B, out_dim), jnp.float32)

    # Advisory cost hint for XLA scheduling around the custom call.
    flops = 2 * B * sum(int(p.shape[0]) * int(p.shape[1])
                        for p in flat_params if p.ndim == 2 and p.shape[0] > 1)
    bytes_accessed = (sum(int(p.size) * int(p.dtype.itemsize) for p in inputs)
                      + 4 * B * out_dim)
    cost = pl.CostEstimate(flops=int(flops),
                           transcendentals=int(B * latent_dim),
                           bytes_accessed=int(bytes_accessed))

    out = pl.pallas_call(
        kernel,
        out_shape=out_shape,
        grid=grid,
        in_specs=in_specs,
        out_specs=out_specs,
        compiler_params=pltpu.CompilerParams(
            dimension_semantics=("parallel",),   # megacore sharding on v7x
            vmem_limit_bytes=32 * 1024 * 1024),
        cost_estimate=cost,
    )(*inputs)

    x_recon = out[:, :input_dim]
    mu = out[:, input_dim:input_dim + latent_dim]
    log_var = out[:, input_dim + latent_dim:]
    return x_recon, mu, log_var


def reference_forward(params, x, y, eps, latent_dim):
    """Pure-JAX reference with the same bf16-matmul / f32-elementwise split."""
    def mm(a, w):
        return jnp.dot(a.astype(jnp.bfloat16), w, preferred_element_type=jnp.float32)

    h = x
    for w, b in params["enc"]:
        h = jnp.maximum(mm(h, w) + b, 0.0)
    lat = mm(h, params["w_lat"]) + params["b_lat"]
    mu, lv = lat[:, :latent_dim], lat[:, latent_dim:]
    z = mu + eps * jnp.exp(0.5 * lv)
    h = jnp.maximum(mm(z, params["w_z"]) + mm(y, params["w_y"]) + params["b_d0"], 0.0)
    for w, b in params["dec"]:
        h = jnp.maximum(mm(h, w) + b, 0.0)
    xr = mm(h, params["w_out"]) + params["b_out"]
    return xr, mu, lv


if __name__ == "__main__":
    # Small model dims (as the forward implies); batch sized to exercise the
    # batch grid (2 tiles of 256 rows -> pipelined, megacore-shardable).
    batch = 512
    input_dim = 16
    latent_dim = 4
    momenta_dim = 4
    hidden_dims = [32, 16]

    key = jax.random.PRNGKey(0)
    kx, ky, keps, kp = jax.random.split(key, 4)

    x = jax.random.normal(kx, (batch, input_dim), dtype=jnp.float32)
    y = jax.random.normal(ky, (batch, momenta_dim), dtype=jnp.float32)
    eps = jax.random.normal(keps, (batch, latent_dim), dtype=jnp.float32)

    params = init_params(kp, input_dim, latent_dim, momenta_dim, hidden_dims)
    flat = tuple(flatten_params(params))

    x_recon, mu, log_var = autoencoder_forward(
        x, y, eps, flat,
        n_enc_hidden=len(hidden_dims),
        n_dec_hidden=len(hidden_dims),
        latent_dim=latent_dim,
        tile_b=256,
    )
    jax.block_until_ready((x_recon, mu, log_var))

    # Tight check against a reference using identical bf16 matmul rounding
    # (differences are f32 accumulation-order / exp ulps only).
    xr_ref, mu_ref, lv_ref = reference_forward(params, x, y, eps, latent_dim)
    assert jnp.allclose(x_recon, xr_ref, rtol=1e-4, atol=1e-4), "x_recon mismatch"
    assert jnp.allclose(mu, mu_ref, rtol=1e-4, atol=1e-4), "mu mismatch"
    assert jnp.allclose(log_var, lv_ref, rtol=1e-4, atol=1e-4), "log_var mismatch"

    print("KERNEL_OK")
</pallas_src>

<mosaic_0001>
module attributes {stable_mosaic.version = 11 : i64} {
  func.func @kernel(%arg0: i32, %arg1: memref<256x16xf32, #tpu.memory_space<vmem>>, %arg2: memref<256x4xf32, #tpu.memory_space<vmem>>, %arg3: memref<256x4xf32, #tpu.memory_space<vmem>>, %arg4: memref<16x32xbf16, #tpu.memory_space<vmem>>, %arg5: memref<1x32xf32, #tpu.memory_space<vmem>>, %arg6: memref<32x16xbf16, #tpu.memory_space<vmem>>, %arg7: memref<1x16xf32, #tpu.memory_space<vmem>>, %arg8: memref<16x8xbf16, #tpu.memory_space<vmem>>, %arg9: memref<1x8xf32, #tpu.memory_space<vmem>>, %arg10: memref<4x16xbf16, #tpu.memory_space<vmem>>, %arg11: memref<4x16xbf16, #tpu.memory_space<vmem>>, %arg12: memref<1x16xf32, #tpu.memory_space<vmem>>, %arg13: memref<16x32xbf16, #tpu.memory_space<vmem>>, %arg14: memref<1x32xf32, #tpu.memory_space<vmem>>, %arg15: memref<32x16xbf16, #tpu.memory_space<vmem>>, %arg16: memref<1x16xf32, #tpu.memory_space<vmem>>, %arg17: memref<256x24xf32, #tpu.memory_space<vmem>>) attributes {dimension_semantics = [#tpu.dimension_semantics<parallel>], iteration_bounds = array<i64: 2>, scalar_prefetch = 0 : i64, scratch_operands = 0 : i64, tpu.core_type = #tpu.core_type<tc>, window_params = [{transform_indices = @transform_0, window_bounds = array<i64: 256, 16>}, {transform_indices = @transform_1, window_bounds = array<i64: 256, 4>}, {transform_indices = @transform_2, window_bounds = array<i64: 256, 4>}, {pipeline_mode = #tpu.pipeline_mode<synchronous>, transform_indices = @transform_3, window_bounds = array<i64: 16, 32>}, {pipeline_mode = #tpu.pipeline_mode<synchronous>, transform_indices = @transform_4, window_bounds = array<i64: 1, 32>}, {pipeline_mode = #tpu.pipeline_mode<synchronous>, transform_indices = @transform_5, window_bounds = array<i64: 32, 16>}, {pipeline_mode = #tpu.pipeline_mode<synchronous>, transform_indices = @transform_6, window_bounds = array<i64: 1, 16>}, {pipeline_mode = #tpu.pipeline_mode<synchronous>, transform_indices = @transform_7, window_bounds = array<i64: 16, 8>}, {pipeline_mode = #tpu.pipeline_mode<synchronous>, transform_indices = @transform_8, window_bounds = array<i64: 1, 8>}, {pipeline_mode = #tpu.pipeline_mode<synchronous>, transform_indices = @transform_9, window_bounds = array<i64: 4, 16>}, {pipeline_mode = #tpu.pipeline_mode<synchronous>, transform_indices = @transform_10, window_bounds = array<i64: 4, 16>}, {pipeline_mode = #tpu.pipeline_mode<synchronous>, transform_indices = @transform_11, window_bounds = array<i64: 1, 16>}, {pipeline_mode = #tpu.pipeline_mode<synchronous>, transform_indices = @transform_12, window_bounds = array<i64: 16, 32>}, {pipeline_mode = #tpu.pipeline_mode<synchronous>, transform_indices = @transform_13, window_bounds = array<i64: 1, 32>}, {pipeline_mode = #tpu.pipeline_mode<synchronous>, transform_indices = @transform_14, window_bounds = array<i64: 32, 16>}, {pipeline_mode = #tpu.pipeline_mode<synchronous>, transform_indices = @transform_15, window_bounds = array<i64: 1, 16>}, {transform_indices = @transform_16, window_bounds = array<i64: 256, 24>}]} {
    %c0 = arith.constant 0 : index
    %c0_0 = arith.constant 0 : index
    %0 = vector.load %arg1[%c0, %c0_0] : memref<256x16xf32, #tpu.memory_space<vmem>>, vector<256x16xf32>
    %1 = arith.truncf %0 : vector<256x16xf32> to vector<256x16xbf16>
    %c0_1 = arith.constant 0 : index
    %c0_2 = arith.constant 0 : index
    %2 = vector.load %arg4[%c0_1, %c0_2] : memref<16x32xbf16, #tpu.memory_space<vmem>>, vector<16x32xbf16>
    %cst = arith.constant dense<0.000000e+00> : vector<256x32xf32>
    %3 = tpu.matmul %1, %2, %cst {dimension_numbers = #tpu.dot_dimension_numbers<[1], [0], [0], [1], [0, 0, 1, 1], [], []>} : vector<256x16xbf16>, vector<16x32xbf16>, vector<256x32xf32> -> vector<256x32xf32>
    %c0_3 = arith.constant 0 : index
    %c0_4 = arith.constant 0 : index
    %4 = vector.load %arg5[%c0_3, %c0_4] : memref<1x32xf32, #tpu.memory_space<vmem>>, vector<1x32xf32>
    %5 = vector.broadcast %4 : vector<1x32xf32> to vector<256x32xf32>
    %6 = arith.addf %3, %5 : vector<256x32xf32>
    %cst_5 = arith.constant 0.000000e+00 : f32
    %7 = vector.broadcast %cst_5 : f32 to vector<256x32xf32>
    %8 = arith.maximumf %6, %7 : vector<256x32xf32>
    %9 = arith.truncf %8 : vector<256x32xf32> to vector<256x32xbf16>
    %c0_6 = arith.constant 0 : index
    %c0_7 = arith.constant 0 : index
    %10 = vector.load %arg6[%c0_6, %c0_7] : memref<32x16xbf16, #tpu.memory_space<vmem>>, vector<32x16xbf16>
    %cst_8 = arith.constant dense<0.000000e+00> : vector<256x16xf32>
    %11 = tpu.matmul %9, %10, %cst_8 {dimension_numbers = #tpu.dot_dimension_numbers<[1], [0], [0], [1], [0, 0, 1, 1], [], []>} : vector<256x32xbf16>, vector<32x16xbf16>, vector<256x16xf32> -> vector<256x16xf32>
    %c0_9 = arith.constant 0 : index
    %c0_10 = arith.constant 0 : index
    %12 = vector.load %arg7[%c0_9, %c0_10] : memref<1x16xf32, #tpu.memory_space<vmem>>, vector<1x16xf32>
    %13 = vector.broadcast %12 : vector<1x16xf32> to vector<256x16xf32>
    %14 = arith.addf %11, %13 : vector<256x16xf32>
    %cst_11 = arith.constant 0.000000e+00 : f32
    %15 = vector.broadcast %cst_11 : f32 to vector<256x16xf32>
    %16 = arith.maximumf %14, %15 : vector<256x16xf32>
    %17 = arith.truncf %16 : vector<256x16xf32> to vector<256x16xbf16>
    %c0_12 = arith.constant 0 : index
    %c0_13 = arith.constant 0 : index
    %18 = vector.load %arg8[%c0_12, %c0_13] : memref<16x8xbf16, #tpu.memory_space<vmem>>, vector<16x8xbf16>
    %cst_14 = arith.constant dense<0.000000e+00> : vector<256x8xf32>
    %19 = tpu.matmul %17, %18, %cst_14 {dimension_numbers = #tpu.dot_dimension_numbers<[1], [0], [0], [1], [0, 0, 1, 1], [], []>} : vector<256x16xbf16>, vector<16x8xbf16>, vector<256x8xf32> -> vector<256x8xf32>
    %c0_15 = arith.constant 0 : index
    %c0_16 = arith.constant 0 : index
    %20 = vector.load %arg9[%c0_15, %c0_16] : memref<1x8xf32, #tpu.memory_space<vmem>>, vector<1x8xf32>
    %21 = vector.broadcast %20 : vector<1x8xf32> to vector<256x8xf32>
    %22 = arith.addf %19, %21 : vector<256x8xf32>
    %c0_17 = arith.constant 0 : index
    %c16 = arith.constant 16 : index
    %23 = vector.load %arg17[%c0_17, %c16] : memref<256x24xf32, #tpu.memory_space<vmem>>, vector<256x8xf32>
    tpu.vector_store %arg17[%c0_17, %c16], %22 {strides = array<i32>} : memref<256x24xf32, #tpu.memory_space<vmem>>, vector<256x8xf32>,
    %24 = vector.extract_strided_slice %22 {offsets = [0, 0], sizes = [256, 4], strides = [1, 1]} : vector<256x8xf32> to vector<256x4xf32>
    %25 = vector.extract_strided_slice %22 {offsets = [0, 4], sizes = [256, 4], strides = [1, 1]} : vector<256x8xf32> to vector<256x4xf32>
    %c0_18 = arith.constant 0 : index
    %c0_19 = arith.constant 0 : index
    %26 = vector.load %arg3[%c0_18, %c0_19] : memref<256x4xf32, #tpu.memory_space<vmem>>, vector<256x4xf32>
    %cst_20 = arith.constant 5.000000e-01 : f32
    %27 = vector.broadcast %cst_20 : f32 to vector<256x4xf32>
    %28 = arith.mulf %27, %25 : vector<256x4xf32>
    %29 = math.exp %28 : vector<256x4xf32>
    %30 = arith.mulf %26, %29 : vector<256x4xf32>
    %31 = arith.addf %24, %30 : vector<256x4xf32>
    %32 = arith.truncf %31 : vector<256x4xf32> to vector<256x4xbf16>
    %c0_21 = arith.constant 0 : index
    %c0_22 = arith.constant 0 : index
    %33 = vector.load %arg10[%c0_21, %c0_22] : memref<4x16xbf16, #tpu.memory_space<vmem>>, vector<4x16xbf16>
    %cst_23 = arith.constant dense<0.000000e+00> : vector<256x16xf32>
    %34 = tpu.matmul %32, %33, %cst_23 {dimension_numbers = #tpu.dot_dimension_numbers<[1], [0], [0], [1], [0, 0, 1, 1], [], []>} : vector<256x4xbf16>, vector<4x16xbf16>, vector<256x16xf32> -> vector<256x16xf32>
    %c0_24 = arith.constant 0 : index
    %c0_25 = arith.constant 0 : index
    %35 = vector.load %arg2[%c0_24, %c0_25] : memref<256x4xf32, #tpu.memory_space<vmem>>, vector<256x4xf32>
    %36 = arith.truncf %35 : vector<256x4xf32> to vector<256x4xbf16>
    %c0_26 = arith.constant 0 : index
    %c0_27 = arith.constant 0 : index
    %37 = vector.load %arg11[%c0_26, %c0_27] : memref<4x16xbf16, #tpu.memory_space<vmem>>, vector<4x16xbf16>
    %cst_28 = arith.constant dense<0.000000e+00> : vector<256x16xf32>
    %38 = tpu.matmul %36, %37, %cst_28 {dimension_numbers = #tpu.dot_dimension_numbers<[1], [0], [0], [1], [0, 0, 1, 1], [], []>} : vector<256x4xbf16>, vector<4x16xbf16>, vector<256x16xf32> -> vector<256x16xf32>
    %39 = arith.addf %34, %38 : vector<256x16xf32>
    %c0_29 = arith.constant 0 : index
    %c0_30 = arith.constant 0 : index
    %40 = vector.load %arg12[%c0_29, %c0_30] : memref<1x16xf32, #tpu.memory_space<vmem>>, vector<1x16xf32>
    %41 = vector.broadcast %40 : vector<1x16xf32> to vector<256x16xf32>
    %42 = arith.addf %39, %41 : vector<256x16xf32>
    %cst_31 = arith.constant 0.000000e+00 : f32
    %43 = vector.broadcast %cst_31 : f32 to vector<256x16xf32>
    %44 = arith.maximumf %42, %43 : vector<256x16xf32>
    %45 = arith.truncf %44 : vector<256x16xf32> to vector<256x16xbf16>
    %c0_32 = arith.constant 0 : index
    %c0_33 = arith.constant 0 : index
    %46 = vector.load %arg13[%c0_32, %c0_33] : memref<16x32xbf16, #tpu.memory_space<vmem>>, vector<16x32xbf16>
    %cst_34 = arith.constant dense<0.000000e+00> : vector<256x32xf32>
    %47 = tpu.matmul %45, %46, %cst_34 {dimension_numbers = #tpu.dot_dimension_numbers<[1], [0], [0], [1], [0, 0, 1, 1], [], []>} : vector<256x16xbf16>, vector<16x32xbf16>, vector<256x32xf32> -> vector<256x32xf32>
    %c0_35 = arith.constant 0 : index
    %c0_36 = arith.constant 0 : index
    %48 = vector.load %arg14[%c0_35, %c0_36] : memref<1x32xf32, #tpu.memory_space<vmem>>, vector<1x32xf32>
    %49 = vector.broadcast %48 : vector<1x32xf32> to vector<256x32xf32>
    %50 = arith.addf %47, %49 : vector<256x32xf32>
    %cst_37 = arith.constant 0.000000e+00 : f32
    %51 = vector.broadcast %cst_37 : f32 to vector<256x32xf32>
    %52 = arith.maximumf %50, %51 : vector<256x32xf32>
    %53 = arith.truncf %52 : vector<256x32xf32> to vector<256x32xbf16>
    %c0_38 = arith.constant 0 : index
    %c0_39 = arith.constant 0 : index
    %54 = vector.load %arg15[%c0_38, %c0_39] : memref<32x16xbf16, #tpu.memory_space<vmem>>, vector<32x16xbf16>
    %cst_40 = arith.constant dense<0.000000e+00> : vector<256x16xf32>
    %55 = tpu.matmul %53, %54, %cst_40 {dimension_numbers = #tpu.dot_dimension_numbers<[1], [0], [0], [1], [0, 0, 1, 1], [], []>} : vector<256x32xbf16>, vector<32x16xbf16>, vector<256x16xf32> -> vector<256x16xf32>
    %c0_41 = arith.constant 0 : index
    %c0_42 = arith.constant 0 : index
    %56 = vector.load %arg16[%c0_41, %c0_42] : memref<1x16xf32, #tpu.memory_space<vmem>>, vector<1x16xf32>
    %57 = vector.broadcast %56 : vector<1x16xf32> to vector<256x16xf32>
    %58 = arith.addf %55, %57 : vector<256x16xf32>
    %c0_43 = arith.constant 0 : index
    %c0_44 = arith.constant 0 : index
    %59 = vector.load %arg17[%c0_43, %c0_44] : memref<256x24xf32, #tpu.memory_space<vmem>>, vector<256x16xf32>
    tpu.vector_store %arg17[%c0_43, %c0_44], %58 {strides = array<i32>} : memref<256x24xf32, #tpu.memory_space<vmem>>, vector<256x16xf32>,
    return
  }
  func.func @transform_0(%arg0: i32) -> (i32, i32) {
    %c0_i32 = arith.constant 0 : i32
    %c0_i32_0 = arith.constant 0 : i32
    return %arg0, %c0_i32 : i32, i32
  }
  func.func @transform_1(%arg0: i32) -> (i32, i32) {
    %c0_i32 = arith.constant 0 : i32
    %c0_i32_0 = arith.constant 0 : i32
    return %arg0, %c0_i32 : i32, i32
  }
  func.func @transform_2(%arg0: i32) -> (i32, i32) {
    %c0_i32 = arith.constant 0 : i32
    %c0_i32_0 = arith.constant 0 : i32
    return %arg0, %c0_i32 : i32, i32
  }
  func.func @transform_3(%arg0: i32) -> (i32, i32) {
    %c0_i32 = arith.constant 0 : i32
    %c0_i32_0 = arith.constant 0 : i32
    %c0_i32_1 = arith.constant 0 : i32
    return %c0_i32, %c0_i32_0 : i32, i32
  }
  func.func @transform_4(%arg0: i32) -> (i32, i32) {
    %c0_i32 = arith.constant 0 : i32
    %c0_i32_0 = arith.constant 0 : i32
    %c0_i32_1 = arith.constant 0 : i32
    return %c0_i32, %c0_i32_0 : i32, i32
  }
  func.func @transform_5(%arg0: i32) -> (i32, i32) {
    %c0_i32 = arith.constant 0 : i32
    %c0_i32_0 = arith.constant 0 : i32
    %c0_i32_1 = arith.constant 0 : i32
    return %c0_i32, %c0_i32_0 : i32, i32
  }
  func.func @transform_6(%arg0: i32) -> (i32, i32) {
    %c0_i32 = arith.constant 0 : i32
    %c0_i32_0 = arith.constant 0 : i32
    %c0_i32_1 = arith.constant 0 : i32
    return %c0_i32, %c0_i32_0 : i32, i32
  }
  func.func @transform_7(%arg0: i32) -> (i32, i32) {
    %c0_i32 = arith.constant 0 : i32
    %c0_i32_0 = arith.constant 0 : i32
    %c0_i32_1 = arith.constant 0 : i32
    return %c0_i32, %c0_i32_0 : i32, i32
  }
  func.func @transform_8(%arg0: i32) -> (i32, i32) {
    %c0_i32 = arith.constant 0 : i32
    %c0_i32_0 = arith.constant 0 : i32
    %c0_i32_1 = arith.constant 0 : i32
    return %c0_i32, %c0_i32_0 : i32, i32
  }
  func.func @transform_9(%arg0: i32) -> (i32, i32) {
    %c0_i32 = arith.constant 0 : i32
    %c0_i32_0 = arith.constant 0 : i32
    %c0_i32_1 = arith.constant 0 : i32
    return %c0_i32, %c0_i32_0 : i32, i32
  }
  func.func @transform_10(%arg0: i32) -> (i32, i32) {
    %c0_i32 = arith.constant 0 : i32
    %c0_i32_0 = arith.constant 0 : i32
    %c0_i32_1 = arith.constant 0 : i32
    return %c0_i32, %c0_i32_0 : i32, i32
  }
  func.func @transform_11(%arg0: i32) -> (i32, i32) {
    %c0_i32 = arith.constant 0 : i32
    %c0_i32_0 = arith.constant 0 : i32
    %c0_i32_1 = arith.constant 0 : i32
    return %c0_i32, %c0_i32_0 : i32, i32
  }
  func.func @transform_12(%arg0: i32) -> (i32, i32) {
    %c0_i32 = arith.constant 0 : i32
    %c0_i32_0 = arith.constant 0 : i32
    %c0_i32_1 = arith.constant 0 : i32
    return %c0_i32, %c0_i32_0 : i32, i32
  }
  func.func @transform_13(%arg0: i32) -> (i32, i32) {
    %c0_i32 = arith.constant 0 : i32
    %c0_i32_0 = arith.constant 0 : i32
    %c0_i32_1 = arith.constant 0 : i32
    return %c0_i32, %c0_i32_0 : i32, i32
  }
  func.func @transform_14(%arg0: i32) -> (i32, i32) {
    %c0_i32 = arith.constant 0 : i32
    %c0_i32_0 = arith.constant 0 : i32
    %c0_i32_1 = arith.constant 0 : i32
    return %c0_i32, %c0_i32_0 : i32, i32
  }
  func.func @transform_15(%arg0: i32) -> (i32, i32) {
    %c0_i32 = arith.constant 0 : i32
    %c0_i32_0 = arith.constant 0 : i32
    %c0_i32_1 = arith.constant 0 : i32
    return %c0_i32, %c0_i32_0 : i32, i32
  }
  func.func @transform_16(%arg0: i32) -> (i32, i32) {
    %c0_i32 = arith.constant 0 : i32
    %c0_i32_0 = arith.constant 0 : i32
    return %arg0, %c0_i32 : i32, i32
  }
}

</mosaic_0001>

<llo_original>
// kernel: autoencoder_forward.1
$region0: #{autoencoder_forward.1}
  #allocation0 [shape = 'u32[]', space=smem, size = 0x4, offset = 0x4, fixed_abs, tag = 'smem constant byte address 0x4 - core index']
  #allocation1 [shape = 'u32[144,128]{1,0:T(1,128)}', space=vmem, size = 0x12000, scoped, tag = 'internal scratch']
  %s0 = inlined_call_operand.vmem [shape: f32[512,16], index: 0, kind: input, shape index: {}]
  %s1 = inlined_call_operand.vmem [shape: f32[512,4], index: 1, kind: input, shape index: {}]
  %s2 = inlined_call_operand.vmem [shape: f32[512,4], index: 2, kind: input, shape index: {}]
  %s3 = inlined_call_operand.vmem [shape: bf16[16,32], index: 3, kind: input, shape index: {}]
  %s4 = inlined_call_operand.vmem [shape: f32[1,32], index: 4, kind: input, shape index: {}]
  %s5 = inlined_call_operand.vmem [shape: bf16[32,16], index: 5, kind: input, shape index: {}]
  %s6 = inlined_call_operand.vmem [shape: f32[1,16], index: 6, kind: input, shape index: {}]
  %s7 = inlined_call_operand.vmem [shape: bf16[16,8], index: 7, kind: input, shape index: {}]
  %s8 = inlined_call_operand.vmem [shape: f32[1,8], index: 8, kind: input, shape index: {}]
  %s9 = inlined_call_operand.vmem [shape: bf16[4,16], index: 9, kind: input, shape index: {}]
  %s10 = inlined_call_operand.vmem [shape: bf16[4,16], index: 10, kind: input, shape index: {}]
  %s11 = inlined_call_operand.vmem [shape: f32[1,16], index: 11, kind: input, shape index: {}]
  %s12 = inlined_call_operand.vmem [shape: bf16[16,32], index: 12, kind: input, shape index: {}]
  %s13 = inlined_call_operand.vmem [shape: f32[1,32], index: 13, kind: input, shape index: {}]
  %s14 = inlined_call_operand.vmem [shape: bf16[32,16], index: 14, kind: input, shape index: {}]
  %s15 = inlined_call_operand.vmem [shape: f32[1,16], index: 15, kind: input, shape index: {}]
  %s16 = inlined_call_operand.vmem [shape: f32[512,24], index: 16, kind: output, shape index: {}]
  %s17 = sld [smem:[#allocation0]]
  $region97: #{autoencoder_forward.1} parent=0
    _
  %s19 = ssub.s32 1, %s17
  %s20 = scalar_select 0, %s19, %s17
  loop: start=0, step=1, limit=4
  $region2: #{autoencoder_forward.1} parent=0 // loop_pre_header
    _
  $region3: #{autoencoder_forward.1} parent=0 // loop_header
    %s22 = sphi 0, %s26
    %p23 = scmp.ge.s32.totalorder %s22, 4
    %s32 = sphi 0, %s34
    %s35 = sphi 0, %s32
    %s36 = sphi 0, %s35
    %s52 = sphi 0, %s36
    %s58 = sphi 0, %s60
    %s61 = sphi 0, %s58
    %s62 = sphi 0, %s61
    %s78 = sphi 0, %s62
    %s84 = sphi 0, %s86
    %s87 = sphi 0, %s84
    %s88 = sphi 0, %s87
    %s104 = sphi 0, %s88
    %s108 = sphi 0, %s108
    %s110 = sphi 0, %s108
    %s111 = sphi 0, %s110
    %s125 = sphi 0, %s111
    %s129 = sphi 0, %s129
    %s131 = sphi 0, %s129
    %s132 = sphi 0, %s131
    %s146 = sphi 0, %s132
    %s150 = sphi 0, %s150
    %s152 = sphi 0, %s150
    %s153 = sphi 0, %s152
    %s167 = sphi 0, %s153
    %s171 = sphi 0, %s171
    %s173 = sphi 0, %s171
    %s174 = sphi 0, %s173
    %s188 = sphi 0, %s174
    %s192 = sphi 0, %s192
    %s194 = sphi 0, %s192
    %s195 = sphi 0, %s194
    %s209 = sphi 0, %s195
    %s213 = sphi 0, %s213
    %s215 = sphi 0, %s213
    %s216 = sphi 0, %s215
    %s230 = sphi 0, %s216
    %s234 = sphi 0, %s234
    %s236 = sphi 0, %s234
    %s237 = sphi 0, %s236
    %s251 = sphi 0, %s237
    %s255 = sphi 0, %s255
    %s257 = sphi 0, %s255
    %s258 = sphi 0, %s257
    %s272 = sphi 0, %s258
    %s276 = sphi 0, %s276
    %s278 = sphi 0, %s276
    %s279 = sphi 0, %s278
    %s293 = sphi 0, %s279
    %s297 = sphi 0, %s297
    %s299 = sphi 0, %s297
    %s300 = sphi 0, %s299
    %s314 = sphi 0, %s300
    %s318 = sphi 0, %s318
    %s320 = sphi 0, %s318
    %s321 = sphi 0, %s320
    %s335 = sphi 0, %s321
    %s339 = sphi 0, %s339
    %s341 = sphi 0, %s339
    %s342 = sphi 0, %s341
    %s356 = sphi 0, %s342
    %s360 = sphi 0, %s360
    %s362 = sphi 0, %s360
    %s363 = sphi 0, %s362
    %s377 = sphi 0, %s363
    %s383 = sphi 0, %s385
    %s386 = sphi 0, %s383
    %s387 = sphi 0, %s386
    %s403 = sphi 0, %s387
  $region4: #{autoencoder_forward.1} parent=0 // loop_header_branch
    %25 = sbr.rel (%p23) target = $region8
  $region5: #{autoencoder_forward.1} parent=0 // loop_body
    %s27 = ssub.s32 %s22, 1
    %s28 = ssub.s32 %s22, 2
    %s29 = sadd.s32 %s22, 1
    %s30 = ssub.s32 %s22, %s29
    %p31 = scmp.eq.s32.totalorder %s30, 0
    %s33 = sadd.s32 %s32, 1
    %s34 = scalar_select %p31, %s32, %s33
    %p37 = pneg %p31
    %p38 = scmp.eq.s32.totalorder %s22, 1
    %p39 = por %p37, %p38
    %p40 = scmp.ne.s32.totalorder %s32, %s35
    %p41 = scmp.eq.s32.totalorder %s22, 0
    %p42 = por %p40, %p41
    %p43 = scmp.ne.s32.totalorder %s32, %s35
    %p44 = scmp.eq.s32.totalorder %s27, 1
    %p45 = por %p43, %p44
    %p46 = scmp.ne.s32.totalorder %s35, %s36
    %p47 = scmp.eq.s32.totalorder %s27, 0
    %p48 = por %p46, %p47
    %p49 = scmp.ne.s32.totalorder %s35, %s36
    %p50 = scmp.eq.s32.totalorder %s28, 1
    %p51 = por %p49, %p50
    %p53 = scmp.ne.s32.totalorder %s36, %s52
    %p54 = scmp.eq.s32.totalorder %s28, 0
    %p55 = por %p53, %p54
    %s56 = ssub.s32 %s22, %s29
    %p57 = scmp.eq.s32.totalorder %s56, 0
    %s59 = sadd.s32 %s58, 1
    %s60 = scalar_select %p57, %s58, %s59
    %p63 = pneg %p57
    %p64 = scmp.eq.s32.totalorder %s22, 1
    %p65 = por %p63, %p64
    %p66 = scmp.ne.s32.totalorder %s58, %s61
    %p67 = scmp.eq.s32.totalorder %s22, 0
    %p68 = por %p66, %p67
    %p69 = scmp.ne.s32.totalorder %s58, %s61
    %p70 = scmp.eq.s32.totalorder %s27, 1
    %p71 = por %p69, %p70
    %p72 = scmp.ne.s32.totalorder %s61, %s62
    %p73 = scmp.eq.s32.totalorder %s27, 0
    %p74 = por %p72, %p73
    %p75 = scmp.ne.s32.totalorder %s61, %s62
    %p76 = scmp.eq.s32.totalorder %s28, 1
    %p77 = por %p75, %p76
    %p79 = scmp.ne.s32.totalorder %s62, %s78
    %p80 = scmp.eq.s32.totalorder %s28, 0
    %p81 = por %p79, %p80
    %s82 = ssub.s32 %s22, %s29
    %p83 = scmp.eq.s32.totalorder %s82, 0
    %s85 = sadd.s32 %s84, 1
    %s86 = scalar_select %p83, %s84, %s85
    %p89 = pneg %p83
    %p90 = scmp.eq.s32.totalorder %s22, 1
    %p91 = por %p89, %p90
    %p92 = scmp.ne.s32.totalorder %s84, %s87
    %p93 = scmp.eq.s32.totalorder %s22, 0
    %p94 = por %p92, %p93
    %p95 = scmp.ne.s32.totalorder %s84, %s87
    %p96 = scmp.eq.s32.totalorder %s27, 1
    %p97 = por %p95, %p96
    %p98 = scmp.ne.s32.totalorder %s87, %s88
    %p99 = scmp.eq.s32.totalorder %s27, 0
    %p100 = por %p98, %p99
    %p101 = scmp.ne.s32.totalorder %s87, %s88
    %p102 = scmp.eq.s32.totalorder %s28, 1
    %p103 = por %p101, %p102
    %p105 = scmp.ne.s32.totalorder %s88, %s104
    %p106 = scmp.eq.s32.totalorder %s28, 0
    %p107 = por %p105, %p106
    %s109 = sadd.s32 %s108, 1
    %p112 = scmp.eq.s32.totalorder %s22, 1
    %p113 = scmp.ne.s32.totalorder %s108, %s110
    %p114 = scmp.eq.s32.totalorder %s22, 0
    %p115 = por %p113, %p114
    %p116 = scmp.ne.s32.totalorder %s108, %s110
    %p117 = scmp.eq.s32.totalorder %s27, 1
    %p118 = por %p116, %p117
    %p119 = scmp.ne.s32.totalorder %s110, %s111
    %p120 = scmp.eq.s32.totalorder %s27, 0
    %p121 = por %p119, %p120
    %p122 = scmp.ne.s32.totalorder %s110, %s111
    %p123 = scmp.eq.s32.totalorder %s28, 1
    %p124 = por %p122, %p123
    %p126 = scmp.ne.s32.totalorder %s111, %s125
    %p127 = scmp.eq.s32.totalorder %s28, 0
    %p128 = por %p126, %p127
    %s130 = sadd.s32 %s129, 1
    %p133 = scmp.eq.s32.totalorder %s22, 1
    %p134 = scmp.ne.s32.totalorder %s129, %s131
    %p135 = scmp.eq.s32.totalorder %s22, 0
    %p136 = por %p134, %p135
    %p137 = scmp.ne.s32.totalorder %s129, %s131
    %p138 = scmp.eq.s32.totalorder %s27, 1
    %p139 = por %p137, %p138
    %p140 = scmp.ne.s32.totalorder %s131, %s132
    %p141 = scmp.eq.s32.totalorder %s27, 0
    %p142 = por %p140, %p141
    %p143 = scmp.ne.s32.totalorder %s131, %s132
    %p144 = scmp.eq.s32.totalorder %s28, 1
    %p145 = por %p143, %p144
    %p147 = scmp.ne.s32.totalorder %s132, %s146
    %p148 = scmp.eq.s32.totalorder %s28, 0
    %p149 = por %p147, %p148
    %s151 = sadd.s32 %s150, 1
    %p154 = scmp.eq.s32.totalorder %s22, 1
    %p155 = scmp.ne.s32.totalorder %s150, %s152
    %p156 = scmp.eq.s32.totalorder %s22, 0
    %p157 = por %p155, %p156
    %p158 = scmp.ne.s32.totalorder %s150, %s152
    %p159 = scmp.eq.s32.totalorder %s27, 1
    %p160 = por %p158, %p159
    %p161 = scmp.ne.s32.totalorder %s152, %s153
    %p162 = scmp.eq.s32.totalorder %s27, 0
    %p163 = por %p161, %p162
    %p164 = scmp.ne.s32.totalorder %s152, %s153
    %p165 = scmp.eq.s32.totalorder %s28, 1
    %p166 = por %p164, %p165
    %p168 = scmp.ne.s32.totalorder %s153, %s167
    %p169 = scmp.eq.s32.totalorder %s28, 0
    %p170 = por %p168, %p169
    %s172 = sadd.s32 %s171, 1
    %p175 = scmp.eq.s32.totalorder %s22, 1
    %p176 = scmp.ne.s32.totalorder %s171, %s173
    %p177 = scmp.eq.s32.totalorder %s22, 0
    %p178 = por %p176, %p177
    %p179 = scmp.ne.s32.totalorder %s171, %s173
    %p180 = scmp.eq.s32.totalorder %s27, 1
    %p181 = por %p179, %p180
    %p182 = scmp.ne.s32.totalorder %s173, %s174
    %p183 = scmp.eq.s32.totalorder %s27, 0
    %p184 = por %p182, %p183
    %p185 = scmp.ne.s32.totalorder %s173, %s174
    %p186 = scmp.eq.s32.totalorder %s28, 1
    %p187 = por %p185, %p186
    %p189 = scmp.ne.s32.totalorder %s174, %s188
    %p190 = scmp.eq.s32.totalorder %s28, 0
    %p191 = por %p189, %p190
    %s193 = sadd.s32 %s192, 1
    %p196 = scmp.eq.s32.totalorder %s22, 1
    %p197 = scmp.ne.s32.totalorder %s192, %s194
    %p198 = scmp.eq.s32.totalorder %s22, 0
    %p199 = por %p197, %p198
    %p200 = scmp.ne.s32.totalorder %s192, %s194
    %p201 = scmp.eq.s32.totalorder %s27, 1
    %p202 = por %p200, %p201
    %p203 = scmp.ne.s32.totalorder %s194, %s195
    %p204 = scmp.eq.s32.totalorder %s27, 0
    %p205 = por %p203, %p204
    %p206 = scmp.ne.s32.totalorder %s194, %s195
    %p207 = scmp.eq.s32.totalorder %s28, 1
    %p208 = por %p206, %p207
    %p210 = scmp.ne.s32.totalorder %s195, %s209
    %p211 = scmp.eq.s32.totalorder %s28, 0
    %p212 = por %p210, %p211
    %s214 = sadd.s32 %s213, 1
    %p217 = scmp.eq.s32.totalorder %s22, 1
    %p218 = scmp.ne.s32.totalorder %s213, %s215
    %p219 = scmp.eq.s32.totalorder %s22, 0
    %p220 = por %p218, %p219
    %p221 = scmp.ne.s32.totalorder %s213, %s215
    %p222 = scmp.eq.s32.totalorder %s27, 1
    %p223 = por %p221, %p222
    %p224 = scmp.ne.s32.totalorder %s215, %s216
    %p225 = scmp.eq.s32.totalorder %s27, 0
    %p226 = por %p224, %p225
    %p227 = scmp.ne.s32.totalorder %s215, %s216
    %p228 = scmp.eq.s32.totalorder %s28, 1
    %p229 = por %p227, %p228
    %p231 = scmp.ne.s32.totalorder %s216, %s230
    %p232 = scmp.eq.s32.totalorder %s28, 0
    %p233 = por %p231, %p232
    %s235 = sadd.s32 %s234, 1
    %p238 = scmp.eq.s32.totalorder %s22, 1
    %p239 = scmp.ne.s32.totalorder %s234, %s236
    %p240 = scmp.eq.s32.totalorder %s22, 0
    %p241 = por %p239, %p240
    %p242 = scmp.ne.s32.totalorder %s234, %s236
    %p243 = scmp.eq.s32.totalorder %s27, 1
    %p244 = por %p242, %p243
    %p245 = scmp.ne.s32.totalorder %s236, %s237
    %p246 = scmp.eq.s32.totalorder %s27, 0
    %p247 = por %p245, %p246
    %p248 = scmp.ne.s32.totalorder %s236, %s237
    %p249 = scmp.eq.s32.totalorder %s28, 1
    %p250 = por %p248, %p249
    %p252 = scmp.ne.s32.totalorder %s237, %s251
    %p253 = scmp.eq.s32.totalorder %s28, 0
    %p254 = por %p252, %p253
    %s256 = sadd.s32 %s255, 1
    %p259 = scmp.eq.s32.totalorder %s22, 1
    %p260 = scmp.ne.s32.totalorder %s255, %s257
    %p261 = scmp.eq.s32.totalorder %s22, 0
    %p262 = por %p260, %p261
    %p263 = scmp.ne.s32.totalorder %s255, %s257
    %p264 = scmp.eq.s32.totalorder %s27, 1
    %p265 = por %p263, %p264
    %p266 = scmp.ne.s32.totalorder %s257, %s258
    %p267 = scmp.eq.s32.totalorder %s27, 0
    %p268 = por %p266, %p267
    %p269 = scmp.ne.s32.totalorder %s257, %s258
    %p270 = scmp.eq.s32.totalorder %s28, 1
    %p271 = por %p269, %p270
    %p273 = scmp.ne.s32.totalorder %s258, %s272
    %p274 = scmp.eq.s32.totalorder %s28, 0
    %p275 = por %p273, %p274
    %s277 = sadd.s32 %s276, 1
    %p280 = scmp.eq.s32.totalorder %s22, 1
    %p281 = scmp.ne.s32.totalorder %s276, %s278
    %p282 = scmp.eq.s32.totalorder %s22, 0
    %p283 = por %p281, %p282
    %p284 = scmp.ne.s32.totalorder %s276, %s278
    %p285 = scmp.eq.s32.totalorder %s27, 1
    %p286 = por %p284, %p285
    %p287 = scmp.ne.s32.totalorder %s278, %s279
    %p288 = scmp.eq.s32.totalorder %s27, 0
    %p289 = por %p287, %p288
    %p290 = scmp.ne.s32.totalorder %s278, %s279
    %p291 = scmp.eq.s32.totalorder %s28, 1
    %p292 = por %p290, %p291
    %p294 = scmp.ne.s32.totalorder %s279, %s293
    %p295 = scmp.eq.s32.totalorder %s28, 0
    %p296 = por %p294, %p295
    %s298 = sadd.s32 %s297, 1
    %p301 = scmp.eq.s32.totalorder %s22, 1
    %p302 = scmp.ne.s32.totalorder %s297, %s299
    %p303 = scmp.eq.s32.totalorder %s22, 0
    %p304 = por %p302, %p303
    %p305 = scmp.ne.s32.totalorder %s297, %s299
    %p306 = scmp.eq.s32.totalorder %s27, 1
    %p307 = por %p305, %p306
    %p308 = scmp.ne.s32.totalorder %s299, %s300
    %p309 = scmp.eq.s32.totalorder %s27, 0
    %p310 = por %p308, %p309
    %p311 = scmp.ne.s32.totalorder %s299, %s300
    %p312 = scmp.eq.s32.totalorder %s28, 1
    %p313 = por %p311, %p312
    %p315 = scmp.ne.s32.totalorder %s300, %s314
    %p316 = scmp.eq.s32.totalorder %s28, 0
    %p317 = por %p315, %p316
    %s319 = sadd.s32 %s318, 1
    %p322 = scmp.eq.s32.totalorder %s22, 1
    %p323 = scmp.ne.s32.totalorder %s318, %s320
    %p324 = scmp.eq.s32.totalorder %s22, 0
    %p325 = por %p323, %p324
    %p326 = scmp.ne.s32.totalorder %s318, %s320
    %p327 = scmp.eq.s32.totalorder %s27, 1
    %p328 = por %p326, %p327
    %p329 = scmp.ne.s32.totalorder %s320, %s321
    %p330 = scmp.eq.s32.totalorder %s27, 0
    %p331 = por %p329, %p330
    %p332 = scmp.ne.s32.totalorder %s320, %s321
    %p333 = scmp.eq.s32.totalorder %s28, 1
    %p334 = por %p332, %p333
    %p336 = scmp.ne.s32.totalorder %s321, %s335
    %p337 = scmp.eq.s32.totalorder %s28, 0
    %p338 = por %p336, %p337
    %s340 = sadd.s32 %s339, 1
    %p343 = scmp.eq.s32.totalorder %s22, 1
    %p344 = scmp.ne.s32.totalorder %s339, %s341
    %p345 = scmp.eq.s32.totalorder %s22, 0
    %p346 = por %p344, %p345
    %p347 = scmp.ne.s32.totalorder %s339, %s341
    %p348 = scmp.eq.s32.totalorder %s27, 1
    %p349 = por %p347, %p348
    %p350 = scmp.ne.s32.totalorder %s341, %s342
    %p351 = scmp.eq.s32.totalorder %s27, 0
    %p352 = por %p350, %p351
    %p353 = scmp.ne.s32.totalorder %s341, %s342
    %p354 = scmp.eq.s32.totalorder %s28, 1
    %p355 = por %p353, %p354
    %p357 = scmp.ne.s32.totalorder %s342, %s356
    %p358 = scmp.eq.s32.totalorder %s28, 0
    %p359 = por %p357, %p358
    %s361 = sadd.s32 %s360, 1
    %p364 = scmp.eq.s32.totalorder %s22, 1
    %p365 = scmp.ne.s32.totalorder %s360, %s362
    %p366 = scmp.eq.s32.totalorder %s22, 0
    %p367 = por %p365, %p366
    %p368 = scmp.ne.s32.totalorder %s360, %s362
    %p369 = scmp.eq.s32.totalorder %s27, 1
    %p370 = por %p368, %p369
    %p371 = scmp.ne.s32.totalorder %s362, %s363
    %p372 = scmp.eq.s32.totalorder %s27, 0
    %p373 = por %p371, %p372
    %p374 = scmp.ne.s32.totalorder %s362, %s363
    %p375 = scmp.eq.s32.totalorder %s28, 1
    %p376 = por %p374, %p375
    %p378 = scmp.ne.s32.totalorder %s363, %s377
    %p379 = scmp.eq.s32.totalorder %s28, 0
    %p380 = por %p378, %p379
    %s381 = ssub.s32 %s22, %s29
    %p382 = scmp.eq.s32.totalorder %s381, 0
    %s384 = sadd.s32 %s383, 1
    %s385 = scalar_select %p382, %s383, %s384
    %p388 = pneg %p382
    %p389 = scmp.eq.s32.totalorder %s22, 1
    %p390 = por %p388, %p389
    %p391 = scmp.ne.s32.totalorder %s383, %s386
    %p392 = scmp.eq.s32.totalorder %s22, 0
    %p393 = por %p391, %p392
    %p394 = scmp.ne.s32.totalorder %s383, %s386
    %p395 = scmp.eq.s32.totalorder %s27, 1
    %p396 = por %p394, %p395
    %p397 = scmp.ne.s32.totalorder %s386, %s387
    %p398 = scmp.eq.s32.totalorder %s27, 0
    %p399 = por %p397, %p398
    %p400 = scmp.ne.s32.totalorder %s386, %s387
    %p401 = scmp.eq.s32.totalorder %s28, 1
    %p402 = por %p400, %p401
    %p404 = scmp.ne.s32.totalorder %s387, %s403
    %p405 = scmp.eq.s32.totalorder %s28, 0
    %p406 = por %p404, %p405
    %p407 = scmp.le.s32.totalorder 1, %s22
    %p408 = scmp.lt.s32.totalorder %s22, 3
    %p409 = pnand %p407, %p408
    %p410 = pneg %p409
    // Predicated region
    $region9: #{autoencoder_forward.1} parent=5 // pred_check
      _
    $region10: #{autoencoder_forward.1} parent=5 // pred_check_branch
      %412 = sbr.rel (%p409) target = $region12
    $region11: #{autoencoder_forward.1} parent=5 // pred_region
      %s413 = ssub.s32 %s22, 1
      // Predicated region
      $region13: #{autoencoder_forward.1} parent=11 // pred_check
        %p414 = pneg %p121
      $region14: #{autoencoder_forward.1} parent=11 // pred_check_branch
        %416 = sbr.rel (%p414) target = $region16
      $region15: #{autoencoder_forward.1} parent=11 // pred_region
        _
      $region16: #{autoencoder_forward.1} parent=11 // pred_fallthru
        _
      // Predicated region
      $region17: #{autoencoder_forward.1} parent=11 // pred_check
        %p417 = pneg %p142
      $region18: #{autoencoder_forward.1} parent=11 // pred_check_branch
        %419 = sbr.rel (%p417) target = $region20
      $region19: #{autoencoder_forward.1} parent=11 // pred_region
        _
      $region20: #{autoencoder_forward.1} parent=11 // pred_fallthru
        _
      // Predicated region
      $region21: #{autoencoder_forward.1} parent=11 // pred_check
        %p420 = pneg %p163
      $region22: #{autoencoder_forward.1} parent=11 // pred_check_branch
        %422 = sbr.rel (%p420) target = $region24
      $region23: #{autoencoder_forward.1} parent=11 // pred_region
        _
      $region24: #{autoencoder_forward.1} parent=11 // pred_fallthru
        _
      // Predicated region
      $region25: #{autoencoder_forward.1} parent=11 // pred_check
        %p423 = pneg %p184
      $region26: #{autoencoder_forward.1} parent=11 // pred_check_branch
        %425 = sbr.rel (%p423) target = $region28
      $region27: #{autoencoder_forward.1} parent=11 // pred_region
        _
      $region28: #{autoencoder_forward.1} parent=11 // pred_fallthru
        _
      // Predicated region
      $region29: #{autoencoder_forward.1} parent=11 // pred_check
        %p426 = pneg %p205
      $region30: #{autoencoder_forward.1} parent=11 // pred_check_branch
        %428 = sbr.rel (%p426) target = $region32
      $region31: #{autoencoder_forward.1} parent=11 // pred_region
        _
      $region32: #{autoencoder_forward.1} parent=11 // pred_fallthru
        _
      // Predicated region
      $region33: #{autoencoder_forward.1} parent=11 // pred_check
        %p429 = pneg %p226
      $region34: #{autoencoder_forward.1} parent=11 // pred_check_branch
        %431 = sbr.rel (%p429) target = $region36
      $region35: #{autoencoder_forward.1} parent=11 // pred_region
        _
      $region36: #{autoencoder_forward.1} parent=11 // pred_fallthru
        _
      // Predicated region
      $region37: #{autoencoder_forward.1} parent=11 // pred_check
        %p432 = pneg %p247
      $region38: #{autoencoder_forward.1} parent=11 // pred_check_branch
        %434 = sbr.rel (%p432) target = $region40
      $region39: #{autoencoder_forward.1} parent=11 // pred_region
        _
      $region40: #{autoencoder_forward.1} parent=11 // pred_fallthru
        _
      // Predicated region
      $region41: #{autoencoder_forward.1} parent=11 // pred_check
        %p435 = pneg %p268
      $region42: #{autoencoder_forward.1} parent=11 // pred_check_branch
        %437 = sbr.rel (%p435) target = $region44
      $region43: #{autoencoder_forward.1} parent=11 // pred_region
        _
      $region44: #{autoencoder_forward.1} parent=11 // pred_fallthru
        _
      // Predicated region
      $region45: #{autoencoder_forward.1} parent=11 // pred_check
        %p438 = pneg %p289
      $region46: #{autoencoder_forward.1} parent=11 // pred_check_branch
        %440 = sbr.rel (%p438) target = $region48
      $region47: #{autoencoder_forward.1} parent=11 // pred_region
        _
      $region48: #{autoencoder_forward.1} parent=11 // pred_fallthru
        _
      // Predicated region
      $region49: #{autoencoder_forward.1} parent=11 // pred_check
        %p441 = pneg %p310
      $region50: #{autoencoder_forward.1} parent=11 // pred_check_branch
        %443 = sbr.rel (%p441) target = $region52
      $region51: #{autoencoder_forward.1} parent=11 // pred_region
        _
      $region52: #{autoencoder_forward.1} parent=11 // pred_fallthru
        _
      // Predicated region
      $region53: #{autoencoder_forward.1} parent=11 // pred_check
        %p444 = pneg %p331
      $region54: #{autoencoder_forward.1} parent=11 // pred_check_branch
        %446 = sbr.rel (%p444) target = $region56
      $region55: #{autoencoder_forward.1} parent=11 // pred_region
        _
      $region56: #{autoencoder_forward.1} parent=11 // pred_fallthru
        _
      // Predicated region
      $region57: #{autoencoder_forward.1} parent=11 // pred_check
        %p447 = pneg %p352
      $region58: #{autoencoder_forward.1} parent=11 // pred_check_branch
        %449 = sbr.rel (%p447) target = $region60
      $region59: #{autoencoder_forward.1} parent=11 // pred_region
        _
      $region60: #{autoencoder_forward.1} parent=11 // pred_fallthru
        _
      // Predicated region
      $region61: #{autoencoder_forward.1} parent=11 // pred_check
        %p450 = pneg %p373
      $region62: #{autoencoder_forward.1} parent=11 // pred_check_branch
        %452 = sbr.rel (%p450) target = $region64
      $region63: #{autoencoder_forward.1} parent=11 // pred_region
        _
      $region64: #{autoencoder_forward.1} parent=11 // pred_fallthru
        _
    $region12: #{autoencoder_forward.1} parent=5 // pred_fallthru
      _
    %p453 = scmp.lt.s32.totalorder %s22, 2
    // Predicated region
    $region65: #{autoencoder_forward.1} parent=5 // pred_check
      %p454 = pneg %p453
    $region66: #{autoencoder_forward.1} parent=5 // pred_check_branch
      %456 = sbr.rel (%p454) target = $region68
    $region67: #{autoencoder_forward.1} parent=5 // pred_region
      // Predicated region
      $region69: #{autoencoder_forward.1} parent=67 // pred_check
        %p457 = pneg %p42
      $region70: #{autoencoder_forward.1} parent=67 // pred_check_branch
        %459 = sbr.rel (%p457) target = $region72
      $region71: #{autoencoder_forward.1} parent=67 // pred_region
        %s460 = smul.u32 32, %s22
        %p461 = scmp.lt.s32.totalorder %s460, 63
        %s462 = scalar_select %p461, %s460, 63
        %s463 = smul.addr %s462, 8
        %s464 = scalar_lea.vmem %s0, %s463
        %s465 = smul.u32 32, %s22
      $region72: #{autoencoder_forward.1} parent=67 // pred_fallthru
        _
      // Predicated region
      $region73: #{autoencoder_forward.1} parent=67 // pred_check
        %p466 = pneg %p68
      $region74: #{autoencoder_forward.1} parent=67 // pred_check_branch
        %468 = sbr.rel (%p466) target = $region76
      $region75: #{autoencoder_forward.1} parent=67 // pred_region
        %s469 = smul.u32 32, %s22
        %p470 = scmp.lt.s32.totalorder %s469, 63
        %s471 = scalar_select %p470, %s469, 63
        %s472 = smul.addr %s471, 8
        %s473 = scalar_lea.vmem %s1, %s472
        %s474 = smul.u32 32, %s22
      $region76: #{autoencoder_forward.1} parent=67 // pred_fallthru
        _
      // Predicated region
      $region77: #{autoencoder_forward.1} parent=67 // pred_check
        %p475 = pneg %p94
      $region78: #{autoencoder_forward.1} parent=67 // pred_check_branch
        %477 = sbr.rel (%p475) target = $region80
      $region79: #{autoencoder_forward.1} parent=67 // pred_region
        %s478 = smul.u32 32, %s22
        %p479 = scmp.lt.s32.totalorder %s478, 63
        %s480 = scalar_select %p479, %s478, 63
        %s481 = smul.addr %s480, 8
        %s482 = scalar_lea.vmem %s2, %s481
        %s483 = smul.u32 32, %s22
      $region80: #{autoencoder_forward.1} parent=67 // pred_fallthru
        _
    $region68: #{autoencoder_forward.1} parent=5 // pred_fallthru
      _
    %p484 = scmp.le.s32.totalorder 1, %s22
    %p485 = scmp.lt.s32.totalorder %s22, 3
    %p486 = pnand %p484, %p485
    %p487 = pneg %p486
    // Predicated region
    $region81: #{autoencoder_forward.1} parent=5 // pred_check
      _
    $region82: #{autoencoder_forward.1} parent=5 // pred_check_branch
      %489 = sbr.rel (%p486) target = $region84
    $region83: #{autoencoder_forward.1} parent=5 // pred_region
      %s490 = ssub.s32 %s22, 1
      %s491 = smul.u32 32, %s27
      %p492 = scmp.lt.s32.totalorder %s491, 63
      %s493 = scalar_select %p492, %s491, 63
      %s494 = smul.addr %s493, 8
      %s495 = scalar_lea.vmem %s0, %s494
      %p496 = pneg %p48
      %p497 = pneg %p45
      %s498 = smul.u32 32, %s27
      %p499 = scmp.lt.s32.totalorder %s498, 63
      %s500 = scalar_select %p499, %s498, 63
      %s501 = smul.addr %s500, 8
      %s502 = scalar_lea.vmem %s1, %s501
      %p503 = pneg %p74
      %p504 = pneg %p71
      %s505 = smul.u32 32, %s27
      %p506 = scmp.lt.s32.totalorder %s505, 63
      %s507 = scalar_select %p506, %s505, 63
      %s508 = smul.addr %s507, 8
      %s509 = scalar_lea.vmem %s2, %s508
      %p510 = pneg %p100
      %p511 = pneg %p97
      %p512 = pneg %p121
      %p513 = pneg %p118
      %p514 = pneg %p142
      %p515 = pneg %p139
      %p516 = pneg %p163
      %p517 = pneg %p160
      %p518 = pneg %p184
      %p519 = pneg %p181
      %p520 = pneg %p205
      %p521 = pneg %p202
      %p522 = pneg %p226
      %p523 = pneg %p223
      %p524 = pneg %p247
      %p525 = pneg %p244
      %p526 = pneg %p268
      %p527 = pneg %p265
      %p528 = pneg %p289
      %p529 = pneg %p286
      %p530 = pneg %p310
      %p531 = pneg %p307
      %p532 = pneg %p331
      %p533 = pneg %p328
      %p534 = pneg %p352
      %p535 = pneg %p349
      %p536 = pneg %p373
      %p537 = pneg %p370
      %p538 = pneg %p399
      %p539 = pneg %p396
      %s540 = smul.u32 32, %s27
      %p541 = scmp.lt.s32.totalorder %s540, 63
      %s542 = scalar_select %p541, %s540, 63
      %s543 = smul.addr %s542, 8
      %s544 = scalar_lea.vmem %s16, %s543
      %s545 = smul.u32 32, %s27
      %p546 = scmp.lt.s32.totalorder %s545, 63
      %s547 = scalar_select %p546, %s545, 63
      %s548 = smul.addr %s547, 8
      %s549 = scalar_lea.vmem %s0, %s548
      %s550 = smul.u32 32, %s27
      %s551 = smul.u32 32, %s27
      %p552 = scmp.lt.s32.totalorder %s551, 63
      %s553 = scalar_select %p552, %s551, 63
      %s554 = smul.addr %s553, 8
      %s555 = scalar_lea.vmem %s1, %s554
      %s556 = smul.u32 32, %s27
      %s557 = smul.u32 32, %s27
      %p558 = scmp.lt.s32.totalorder %s557, 63
      %s559 = scalar_select %p558, %s557, 63
      %s560 = smul.addr %s559, 8
      %s561 = scalar_lea.vmem %s2, %s560
      %s562 = smul.u32 32, %s27
      %s563 = smul.u32 32, %s27
      %p564 = scmp.lt.s32.totalorder %s563, 63
      %s565 = scalar_select %p564, %s563, 63
      %s566 = smul.addr %s565, 8
      %s567 = scalar_lea.vmem %s16, %s566
      %s568 = smul.u32 32, %s27
      %v570 = vld [vmem:[%s549] sm:$0xff]
      %v571 = vld [vmem:[%s549 + $0x8] sm:$0xff]
      %v572 = vld [vmem:[%s549 + $0x10] sm:$0xff]
      %v573 = vld [vmem:[%s549 + $0x18] sm:$0xff]
      %v574 = vld [vmem:[%s549 + $0x20] sm:$0xff]
      %v575 = vld [vmem:[%s549 + $0x28] sm:$0xff]
      %v576 = vld [vmem:[%s549 + $0x30] sm:$0xff]
      %v577 = vld [vmem:[%s549 + $0x38] sm:$0xff]
      %v578 = vld [vmem:[%s549 + $0x40] sm:$0xff]
      %v579 = vld [vmem:[%s549 + $0x48] sm:$0xff]
      %v580 = vld [vmem:[%s549 + $0x50] sm:$0xff]
      %v581 = vld [vmem:[%s549 + $0x58] sm:$0xff]
      %v582 = vld [vmem:[%s549 + $0x60] sm:$0xff]
      %v583 = vld [vmem:[%s549 + $0x68] sm:$0xff]
      %v584 = vld [vmem:[%s549 + $0x70] sm:$0xff]
      %v585 = vld [vmem:[%s549 + $0x78] sm:$0xff]
      %v586 = vld [vmem:[%s549 + $0x80] sm:$0xff]
      %v587 = vld [vmem:[%s549 + $0x88] sm:$0xff]
      %v588 = vld [vmem:[%s549 + $0x90] sm:$0xff]
      %v589 = vld [vmem:[%s549 + $0x98] sm:$0xff]
      %v590 = vld [vmem:[%s549 + $0xa0] sm:$0xff]
      %v591 = vld [vmem:[%s549 + $0xa8] sm:$0xff]
      %v592 = vld [vmem:[%s549 + $0xb0] sm:$0xff]
      %v593 = vld [vmem:[%s549 + $0xb8] sm:$0xff]
      %v594 = vld [vmem:[%s549 + $0xc0] sm:$0xff]
      %v595 = vld [vmem:[%s549 + $0xc8] sm:$0xff]
      %v596 = vld [vmem:[%s549 + $0xd0] sm:$0xff]
      %v597 = vld [vmem:[%s549 + $0xd8] sm:$0xff]
      %v598 = vld [vmem:[%s549 + $0xe0] sm:$0xff]
      %v599 = vld [vmem:[%s549 + $0xe8] sm:$0xff]
      %v600 = vld [vmem:[%s549 + $0xf0] sm:$0xff]
      %v601 = vld [vmem:[%s549 + $0xf8] sm:$0xff]
      %v602 = vpack.c.bf16 %v571, %v570
      %v603 = vpack.c.bf16 %v573, %v572
      %v604 = vpack.c.bf16 %v575, %v574
      %v605 = vpack.c.bf16 %v577, %v576
      %v606 = vpack.c.bf16 %v579, %v578
      %v607 = vpack.c.bf16 %v581, %v580
      %v608 = vpack.c.bf16 %v583, %v582
      %v609 = vpack.c.bf16 %v585, %v584
      %v610 = vpack.c.bf16 %v587, %v586
      %v611 = vpack.c.bf16 %v589, %v588
      %v612 = vpack.c.bf16 %v591, %v590
      %v613 = vpack.c.bf16 %v593, %v592
      %v614 = vpack.c.bf16 %v595, %v594
      %v615 = vpack.c.bf16 %v597, %v596
      %v616 = vpack.c.bf16 %v599, %v598
      %v617 = vpack.c.bf16 %v601, %v600
      %v618 = vld [vmem:[%s3] sm:$0xf]
      %v619 = vld [vmem:[%s3 + $0x4] sm:$0xf]
      %v620 = vld [vmem:[%s4] sm:$0x1]
      %v622 = vlaneseq
      %v623 = vshrl.u32 %v622, 7
      %v624 = vsub.s32 0, %v623
      %v625 = vrot.slane %v620, %v624
      %v629 = vunpack.c.l.b16 %v618
      %v630 = vunpack.c.l.b16 %v619
      %v631 = vpack.c.b16 %v630, %v629
      %vm633 = vcmask 130048
      %v635 = vsel %vm633, %v602, 0
      %v638 = vsel %vm633, %v603, 0
      %v641 = vsel %vm633, %v604, 0
      %v644 = vsel %vm633, %v605, 0
      %v647 = vsel %vm633, %v606, 0
      %v650 = vsel %vm633, %v607, 0
      %v653 = vsel %vm633, %v608, 0
      %v656 = vsel %vm633, %v609, 0
      %v659 = vsel %vm633, %v610, 0
      %v662 = vsel %vm633, %v611, 0
      %v665 = vsel %vm633, %v612, 0
      %v668 = vsel %vm633, %v613, 0
      %v671 = vsel %vm633, %v614, 0
      %v674 = vsel %vm633, %v615, 0
      %v677 = vsel %vm633, %v616, 0
      %v680 = vsel %vm633, %v617, 0
      %682 = vmatprep.subr.bf16.mxu0 0
      %683 = vmatpush1.bf16.msra.mxu0 %v631
      %684 = vmatprep.subr.bf16.mxu0 0
      %685 = vmatpush1.bf16.msra.mxu0 0
      %686 = vmatprep.subr.bf16.mxu0 0
      %687 = vmatpush1.bf16.msra.mxu0 0
      %688 = vmatprep.subr.bf16.mxu0 0
      %689 = vmatpush1.bf16.msra.mxu0 0
      %690 = vmatprep.subr.bf16.mxu0 0
      %691 = vmatpush1.bf16.msra.mxu0 0
      %692 = vmatprep.subr.bf16.mxu0 0
      %693 = vmatpush1.bf16.msra.mxu0 0
      %694 = vmatprep.subr.bf16.mxu0 0
      %695 = vmatpush1.bf16.msra.mxu0 0
      %696 = vmatprep.subr.bf16.mxu0 0
      %697 = vmatpush1.bf16.msra.mxu0 0
      %698 = vmatprep.subr.bf16.mxu0 0
      %699 = vmatpush1.bf16.msra.mxu0 0
      %700 = vmatprep.subr.bf16.mxu0 0
      %701 = vmatpush1.bf16.msra.mxu0 0
      %702 = vmatprep.subr.bf16.mxu0 0
      %703 = vmatpush1.bf16.msra.mxu0 0
      %704 = vmatprep.subr.bf16.mxu0 0
      %705 = vmatpush1.bf16.msra.mxu0 0
      %706 = vmatprep.subr.bf16.mxu0 0
      %707 = vmatpush1.bf16.msra.mxu0 0
      %708 = vmatprep.subr.bf16.mxu0 0
      %709 = vmatpush1.bf16.msra.mxu0 0
      %710 = vmatprep.subr.bf16.mxu0 0
      %711 = vmatpush1.bf16.msra.mxu0 0
      %712 = vmatprep.subr.bf16.mxu0 0
      %713 = vmatpush1.bf16.msra.mxu0 0
      %714 = vmatprep.mubr.bf16.mxu0 0
      %715 = vmatmul.mubr.bf16.gmra.mrb[0].mxu0 %v635
      %v716 = vpop.f32.mrb[0].mxu0
      %v717 = vadd.f32 %v625, %v716
      %v718 = vpop.f32.mrb[0].mxu0
      %v719 = vpop.f32.mrb[0].mxu0
      %v720 = vadd.f32 %v625, %v719
      %v721 = vpop.f32.mrb[0].mxu0
      %722 = vmatprep.mubr.bf16.mxu0 0
      %723 = vmatmul.mubr.bf16.gmra.mrb[0].mxu0 %v638
      %v724 = vpop.f32.mrb[0].mxu0
      %v725 = vadd.f32 %v625, %v724
      %v726 = vpop.f32.mrb[0].mxu0
      %v727 = vpop.f32.mrb[0].mxu0
      %v728 = vadd.f32 %v625, %v727
      %v729 = vpop.f32.mrb[0].mxu0
      %730 = vmatprep.mubr.bf16.mxu0 0
      %731 = vmatmul.mubr.bf16.gmra.mrb[0].mxu0 %v641
      %v732 = vpop.f32.mrb[0].mxu0
      %v733 = vadd.f32 %v625, %v732
      %v734 = vpop.f32.mrb[0].mxu0
      %v735 = vpop.f32.mrb[0].mxu0
      %v736 = vadd.f32 %v625, %v735
      %v737 = vpop.f32.mrb[0].mxu0
      %738 = vmatprep.mubr.bf16.mxu0 0
      %739 = vmatmul.mubr.bf16.gmra.mrb[0].mxu0 %v644
      %v740 = vpop.f32.mrb[0].mxu0
      %v741 = vadd.f32 %v625, %v740
      %v742 = vpop.f32.mrb[0].mxu0
      %v743 = vpop.f32.mrb[0].mxu0
      %v744 = vadd.f32 %v625, %v743
      %v745 = vpop.f32.mrb[0].mxu0
      %746 = vmatprep.mubr.bf16.mxu0 0
      %747 = vmatmul.mubr.bf16.gmra.mrb[0].mxu0 %v647
      %v748 = vpop.f32.mrb[0].mxu0
      %v749 = vadd.f32 %v625, %v748
      %v750 = vpop.f32.mrb[0].mxu0
      %v751 = vpop.f32.mrb[0].mxu0
      %v752 = vadd.f32 %v625, %v751
      %v753 = vpop.f32.mrb[0].mxu0
      %754 = vmatprep.mubr.bf16.mxu0 0
      %755 = vmatmul.mubr.bf16.gmra.mrb[0].mxu0 %v650
      %v756 = vpop.f32.mrb[0].mxu0
      %v757 = vadd.f32 %v625, %v756
      %v758 = vpop.f32.mrb[0].mxu0
      %v759 = vpop.f32.mrb[0].mxu0
      %v760 = vadd.f32 %v625, %v759
      %v761 = vpop.f32.mrb[0].mxu0
      %762 = vmatprep.mubr.bf16.mxu0 0
      %763 = vmatmul.mubr.bf16.gmra.mrb[0].mxu0 %v653
      %v764 = vpop.f32.mrb[0].mxu0
      %v765 = vadd.f32 %v625, %v764
      %v766 = vpop.f32.mrb[0].mxu0
      %v767 = vpop.f32.mrb[0].mxu0
      %v768 = vadd.f32 %v625, %v767
      %v769 = vpop.f32.mrb[0].mxu0
      %770 = vmatprep.mubr.bf16.mxu0 0
      %771 = vmatmul.mubr.bf16.gmra.mrb[0].mxu0 %v656
      %v772 = vpop.f32.mrb[0].mxu0
      %v773 = vadd.f32 %v625, %v772
      %v774 = vpop.f32.mrb[0].mxu0
      %v775 = vpop.f32.mrb[0].mxu0
      %v776 = vadd.f32 %v625, %v775
      %v777 = vpop.f32.mrb[0].mxu0
      %778 = vmatprep.mubr.bf16.mxu0 0
      %779 = vmatmul.mubr.bf16.gmra.mrb[0].mxu0 %v659
      %v780 = vpop.f32.mrb[0].mxu0
      %v781 = vadd.f32 %v625, %v780
      %v782 = vpop.f32.mrb[0].mxu0
      %v783 = vpop.f32.mrb[0].mxu0
      %v784 = vadd.f32 %v625, %v783
      %v785 = vpop.f32.mrb[0].mxu0
      %786 = vmatprep.mubr.bf16.mxu0 0
      %787 = vmatmul.mubr.bf16.gmra.mrb[0].mxu0 %v662
      %v788 = vpop.f32.mrb[0].mxu0
      %v789 = vadd.f32 %v625, %v788
      %v790 = vpop.f32.mrb[0].mxu0
      %v791 = vpop.f32.mrb[0].mxu0
      %v792 = vadd.f32 %v625, %v791
      %v793 = vpop.f32.mrb[0].mxu0
      %794 = vmatprep.mubr.bf16.mxu0 0
      %795 = vmatmul.mubr.bf16.gmra.mrb[0].mxu0 %v665
      %v796 = vpop.f32.mrb[0].mxu0
      %v797 = vadd.f32 %v625, %v796
      %v798 = vpop.f32.mrb[0].mxu0
      %v799 = vpop.f32.mrb[0].mxu0
      %v800 = vadd.f32 %v625, %v799
      %v801 = vpop.f32.mrb[0].mxu0
      %802 = vmatprep.mubr.bf16.mxu0 0
      %803 = vmatmul.mubr.bf16.gmra.mrb[0].mxu0 %v668
      %v804 = vpop.f32.mrb[0].mxu0
      %v805 = vadd.f32 %v625, %v804
      %v806 = vpop.f32.mrb[0].mxu0
      %v807 = vpop.f32.mrb[0].mxu0
      %v808 = vadd.f32 %v625, %v807
      %v809 = vpop.f32.mrb[0].mxu0
      %810 = vmatprep.mubr.bf16.mxu0 0
      %811 = vmatmul.mubr.bf16.gmra.mrb[0].mxu0 %v671
      %v812 = vpop.f32.mrb[0].mxu0
      %v813 = vadd.f32 %v625, %v812
      %v814 = vpop.f32.mrb[0].mxu0
      %v815 = vpop.f32.mrb[0].mxu0
      %v816 = vadd.f32 %v625, %v815
      %v817 = vpop.f32.mrb[0].mxu0
      %818 = vmatprep.mubr.bf16.mxu0 0
      %819 = vmatmul.mubr.bf16.gmra.mrb[0].mxu0 %v674
      %v820 = vpop.f32.mrb[0].mxu0
      %v821 = vadd.f32 %v625, %v820
      %v822 = vpop.f32.mrb[0].mxu0
      %v823 = vpop.f32.mrb[0].mxu0
      %v824 = vadd.f32 %v625, %v823
      %v825 = vpop.f32.mrb[0].mxu0
      %826 = vmatprep.mubr.bf16.mxu0 0
      %827 = vmatmul.mubr.bf16.gmra.mrb[0].mxu0 %v677
      %v828 = vpop.f32.mrb[0].mxu0
      %v829 = vadd.f32 %v625, %v828
      %v830 = vpop.f32.mrb[0].mxu0
      %v831 = vpop.f32.mrb[0].mxu0
      %v832 = vadd.f32 %v625, %v831
      %v833 = vpop.f32.mrb[0].mxu0
      %834 = vmatprep.mubr.bf16.mxu0 0
      %835 = vmatmul.mubr.bf16.gmra.mrb[0].mxu0 %v680
      %v836 = vpop.f32.mrb[0].mxu0
      %v837 = vadd.f32 %v625, %v836
      %v838 = vpop.f32.mrb[0].mxu0
      %v839 = vpop.f32.mrb[0].mxu0
      %v840 = vadd.f32 %v625, %v839
      %v841 = vpop.f32.mrb[0].mxu0
      %842 = vdwg.mxu0
      %v843 = vmax.f32 %v717, 0.0
      %v844 = vmax.f32 %v720, 0.0
      %v845 = vmax.f32 %v725, 0.0
      %v846 = vmax.f32 %v728, 0.0
      %v847 = vmax.f32 %v733, 0.0
      %v848 = vmax.f32 %v736, 0.0
      %v849 = vmax.f32 %v741, 0.0
      %v850 = vmax.f32 %v744, 0.0
      %v851 = vmax.f32 %v749, 0.0
      %v852 = vmax.f32 %v752, 0.0
      %v853 = vmax.f32 %v757, 0.0
      %v854 = vmax.f32 %v760, 0.0
      %v855 = vmax.f32 %v765, 0.0
      %v856 = vmax.f32 %v768, 0.0
      %v857 = vmax.f32 %v773, 0.0
      %v858 = vmax.f32 %v776, 0.0
      %v859 = vmax.f32 %v781, 0.0
      %v860 = vmax.f32 %v784, 0.0
      %v861 = vmax.f32 %v789, 0.0
      %v862 = vmax.f32 %v792, 0.0
      %v863 = vmax.f32 %v797, 0.0
      %v864 = vmax.f32 %v800, 0.0
      %v865 = vmax.f32 %v805, 0.0
      %v866 = vmax.f32 %v808, 0.0
      %v867 = vmax.f32 %v813, 0.0
      %v868 = vmax.f32 %v816, 0.0
      %v869 = vmax.f32 %v821, 0.0
      %v870 = vmax.f32 %v824, 0.0
      %v871 = vmax.f32 %v829, 0.0
      %v872 = vmax.f32 %v832, 0.0
      %v873 = vmax.f32 %v837, 0.0
      %v874 = vmax.f32 %v840, 0.0
      %v875 = vpack.c.bf16 %v844, %v843
      %v876 = vpack.c.bf16 %v846, %v845
      %v877 = vpack.c.bf16 %v848, %v847
      %v878 = vpack.c.bf16 %v850, %v849
      %v879 = vpack.c.bf16 %v852, %v851
      %v880 = vpack.c.bf16 %v854, %v853
      %v881 = vpack.c.bf16 %v856, %v855
      %v882 = vpack.c.bf16 %v858, %v857
      %v883 = vpack.c.bf16 %v860, %v859
      %v884 = vpack.c.bf16 %v862, %v861
      %v885 = vpack.c.bf16 %v864, %v863
      %v886 = vpack.c.bf16 %v866, %v865
      %v887 = vpack.c.bf16 %v868, %v867
      %v888 = vpack.c.bf16 %v870, %v869
      %v889 = vpack.c.bf16 %v872, %v871
      %v890 = vpack.c.bf16 %v874, %v873
      %v891 = vld [vmem:[%s5] sm:$0xf]
      %v892 = vld [vmem:[%s5 + $0x4] sm:$0xf]
      %v893 = vld [vmem:[%s5 + $0x8] sm:$0xf]
      %v894 = vld [vmem:[%s5 + $0xc] sm:$0xf]
      %v895 = vld [vmem:[%s6] sm:$0x1]
      %v897 = vlaneseq
      %v898 = vshrl.u32 %v897, 7
      %v899 = vsub.s32 0, %v898
      %v900 = vrot.slane %v895, %v899
      %v906 = vunpack.c.l.b16 %v891
      %v907 = vunpack.c.l.b16 %v892
      %v908 = vunpack.c.l.b16 %v893
      %v909 = vunpack.c.l.b16 %v894
      %v910 = vpack.c.b16 %v907, %v906
      %v911 = vpack.c.b16 %v909, %v908
      %vm914 = vcmask 261120
      %v916 = vsel %vm914, %v875, 0
      %v919 = vsel %vm914, %v876, 0
      %v922 = vsel %vm914, %v877, 0
      %v925 = vsel %vm914, %v878, 0
      %v928 = vsel %vm914, %v879, 0
      %v931 = vsel %vm914, %v880, 0
      %v934 = vsel %vm914, %v881, 0
      %v937 = vsel %vm914, %v882, 0
      %v940 = vsel %vm914, %v883, 0
      %v943 = vsel %vm914, %v884, 0
      %v946 = vsel %vm914, %v885, 0
      %v949 = vsel %vm914, %v886, 0
      %v952 = vsel %vm914, %v887, 0
      %v955 = vsel %vm914, %v888, 0
      %v958 = vsel %vm914, %v889, 0
      %v961 = vsel %vm914, %v890, 0
      %963 = vmatprep.subr.bf16.mxu0 0
      %964 = vmatpush1.bf16.msra.mxu0 %v910
      %965 = vmatprep.subr.bf16.mxu0 0
      %966 = vmatpush1.bf16.msra.mxu0 %v911
      %967 = vmatprep.subr.bf16.mxu0 0
      %968 = vmatpush1.bf16.msra.mxu0 0
      %969 = vmatprep.subr.bf16.mxu0 0
      %970 = vmatpush1.bf16.msra.mxu0 0
      %971 = vmatprep.subr.bf16.mxu0 0
      %972 = vmatpush1.bf16.msra.mxu0 0
      %973 = vmatprep.subr.bf16.mxu0 0
      %974 = vmatpush1.bf16.msra.mxu0 0
      %975 = vmatprep.subr.bf16.mxu0 0
      %976 = vmatpush1.bf16.msra.mxu0 0
      %977 = vmatprep.subr.bf16.mxu0 0
      %978 = vmatpush1.bf16.msra.mxu0 0
      %979 = vmatprep.subr.bf16.mxu0 0
      %980 = vmatpush1.bf16.msra.mxu0 0
      %981 = vmatprep.subr.bf16.mxu0 0
      %982 = vmatpush1.bf16.msra.mxu0 0
      %983 = vmatprep.subr.bf16.mxu0 0
      %984 = vmatpush1.bf16.msra.mxu0 0
      %985 = vmatprep.subr.bf16.mxu0 0
      %986 = vmatpush1.bf16.msra.mxu0 0
      %987 = vmatprep.subr.bf16.mxu0 0
      %988 = vmatpush1.bf16.msra.mxu0 0
      %989 = vmatprep.subr.bf16.mxu0 0
      %990 = vmatpush1.bf16.msra.mxu0 0
      %991 = vmatprep.subr.bf16.mxu0 0
      %992 = vmatpush1.bf16.msra.mxu0 0
      %993 = vmatprep.subr.bf16.mxu0 0
      %994 = vmatpush1.bf16.msra.mxu0 0
      %995 = vmatprep.mubr.bf16.mxu0 0
      %996 = vmatmul.mubr.bf16.gmra.mrb[0].mxu0 %v916
      %v997 = vpop.f32.mrb[0].mxu0
      %v998 = vadd.f32 %v900, %v997
      %v999 = vpop.f32.mrb[0].mxu0
      %v1000 = vpop.f32.mrb[0].mxu0
      %v1001 = vadd.f32 %v900, %v1000
      %v1002 = vpop.f32.mrb[0].mxu0
      %1003 = vmatprep.mubr.bf16.mxu0 0
      %1004 = vmatmul.mubr.bf16.gmra.mrb[0].mxu0 %v919
      %v1005 = vpop.f32.mrb[0].mxu0
      %v1006 = vadd.f32 %v900, %v1005
      %v1007 = vpop.f32.mrb[0].mxu0
      %v1008 = vpop.f32.mrb[0].mxu0
      %v1009 = vadd.f32 %v900, %v1008
      %v1010 = vpop.f32.mrb[0].mxu0
      %1011 = vmatprep.mubr.bf16.mxu0 0
      %1012 = vmatmul.mubr.bf16.gmra.mrb[0].mxu0 %v922
      %v1013 = vpop.f32.mrb[0].mxu0
      %v1014 = vadd.f32 %v900, %v1013
      %v1015 = vpop.f32.mrb[0].mxu0
      %v1016 = vpop.f32.mrb[0].mxu0
      %v1017 = vadd.f32 %v900, %v1016
      %v1018 = vpop.f32.mrb[0].mxu0
      %1019 = vmatprep.mubr.bf16.mxu0 0
      %1020 = vmatmul.mubr.bf16.gmra.mrb[0].mxu0 %v925
      %v1021 = vpop.f32.mrb[0].mxu0
      %v1022 = vadd.f32 %v900, %v1021
      %v1023 = vpop.f32.mrb[0].mxu0
      %v1024 = vpop.f32.mrb[0].mxu0
      %v1025 = vadd.f32 %v900, %v1024
      %v1026 = vpop.f32.mrb[0].mxu0
      %1027 = vmatprep.mubr.bf16.mxu0 0
      %1028 = vmatmul.mubr.bf16.gmra.mrb[0].mxu0 %v928
      %v1029 = vpop.f32.mrb[0].mxu0
      %v1030 = vadd.f32 %v900, %v1029
      %v1031 = vpop.f32.mrb[0].mxu0
      %v1032 = vpop.f32.mrb[0].mxu0
      %v1033 = vadd.f32 %v900, %v1032
      %v1034 = vpop.f32.mrb[0].mxu0
      %1035 = vmatprep.mubr.bf16.mxu0 0
      %1036 = vmatmul.mubr.bf16.gmra.mrb[0].mxu0 %v931
      %v1037 = vpop.f32.mrb[0].mxu0
      %v1038 = vadd.f32 %v900, %v1037
      %v1039 = vpop.f32.mrb[0].mxu0
      %v1040 = vpop.f32.mrb[0].mxu0
      %v1041 = vadd.f32 %v900, %v1040
      %v1042 = vpop.f32.mrb[0].mxu0
      %1043 = vmatprep.mubr.bf16.mxu0 0
      %1044 = vmatmul.mubr.bf16.gmra.mrb[0].mxu0 %v934
      %v1045 = vpop.f32.mrb[0].mxu0
      %v1046 = vadd.f32 %v900, %v1045
      %v1047 = vpop.f32.mrb[0].mxu0
      %v1048 = vpop.f32.mrb[0].mxu0
      %v1049 = vadd.f32 %v900, %v1048
      %v1050 = vpop.f32.mrb[0].mxu0
      %1051 = vmatprep.mubr.bf16.mxu0 0
      %1052 = vmatmul.mubr.bf16.gmra.mrb[0].mxu0 %v937
      %v1053 = vpop.f32.mrb[0].mxu0
      %v1054 = vadd.f32 %v900, %v1053
      %v1055 = vpop.f32.mrb[0].mxu0
      %v1056 = vpop.f32.mrb[0].mxu0
      %v1057 = vadd.f32 %v900, %v1056
      %v1058 = vpop.f32.mrb[0].mxu0
      %1059 = vmatprep.mubr.bf16.mxu0 0
      %1060 = vmatmul.mubr.bf16.gmra.mrb[0].mxu0 %v940
      %v1061 = vpop.f32.mrb[0].mxu0
      %v1062 = vadd.f32 %v900, %v1061
      %v1063 = vpop.f32.mrb[0].mxu0
      %v1064 = vpop.f32.mrb[0].mxu0
      %v1065 = vadd.f32 %v900, %v1064
      %v1066 = vpop.f32.mrb[0].mxu0
      %1067 = vmatprep.mubr.bf16.mxu0 0
      %1068 = vmatmul.mubr.bf16.gmra.mrb[0].mxu0 %v943
      %v1069 = vpop.f32.mrb[0].mxu0
      %v1070 = vadd.f32 %v900, %v1069
      %v1071 = vpop.f32.mrb[0].mxu0
      %v1072 = vpop.f32.mrb[0].mxu0
      %v1073 = vadd.f32 %v900, %v1072
      %v1074 = vpop.f32.mrb[0].mxu0
      %1075 = vmatprep.mubr.bf16.mxu0 0
      %1076 = vmatmul.mubr.bf16.gmra.mrb[0].mxu0 %v946
      %v1077 = vpop.f32.mrb[0].mxu0
      %v1078 = vadd.f32 %v900, %v1077
      %v1079 = vpop.f32.mrb[0].mxu0
      %v1080 = vpop.f32.mrb[0].mxu0
      %v1081 = vadd.f32 %v900, %v1080
      %v1082 = vpop.f32.mrb[0].mxu0
      %1083 = vmatprep.mubr.bf16.mxu0 0
      %1084 = vmatmul.mubr.bf16.gmra.mrb[0].mxu0 %v949
      %v1085 = vpop.f32.mrb[0].mxu0
      %v1086 = vadd.f32 %v900, %v1085
      %v1087 = vpop.f32.mrb[0].mxu0
      %v1088 = vpop.f32.mrb[0].mxu0
      %v1089 = vadd.f32 %v900, %v1088
      %v1090 = vpop.f32.mrb[0].mxu0
      %1091 = vmatprep.mubr.bf16.mxu0 0
      %1092 = vmatmul.mubr.bf16.gmra.mrb[0].mxu0 %v952
      %v1093 = vpop.f32.mrb[0].mxu0
      %v1094 = vadd.f32 %v900, %v1093
      %v1095 = vpop.f32.mrb[0].mxu0
      %v1096 = vpop.f32.mrb[0].mxu0
      %v1097 = vadd.f32 %v900, %v1096
      %v1098 = vpop.f32.mrb[0].mxu0
      %1099 = vmatprep.mubr.bf16.mxu0 0
      %1100 = vmatmul.mubr.bf16.gmra.mrb[0].mxu0 %v955
      %v1101 = vpop.f32.mrb[0].mxu0
      %v1102 = vadd.f32 %v900, %v1101
      %v1103 = vpop.f32.mrb[0].mxu0
      %v1104 = vpop.f32.mrb[0].mxu0
      %v1105 = vadd.f32 %v900, %v1104
      %v1106 = vpop.f32.mrb[0].mxu0
      %1107 = vmatprep.mubr.bf16.mxu0 0
      %1108 = vmatmul.mubr.bf16.gmra.mrb[0].mxu0 %v958
      %v1109 = vpop.f32.mrb[0].mxu0
      %v1110 = vadd.f32 %v900, %v1109
      %v1111 = vpop.f32.mrb[0].mxu0
      %v1112 = vpop.f32.mrb[0].mxu0
      %v1113 = vadd.f32 %v900, %v1112
      %v1114 = vpop.f32.mrb[0].mxu0
      %1115 = vmatprep.mubr.bf16.mxu0 0
      %1116 = vmatmul.mubr.bf16.gmra.mrb[0].mxu0 %v961
      %v1117 = vpop.f32.mrb[0].mxu0
      %v1118 = vadd.f32 %v900, %v1117
      %v1119 = vpop.f32.mrb[0].mxu0
      %v1120 = vpop.f32.mrb[0].mxu0
      %v1121 = vadd.f32 %v900, %v1120
      %v1122 = vpop.f32.mrb[0].mxu0
      %1123 = vdwg.mxu0
      %v1124 = vmax.f32 %v998, 0.0
      %v1125 = vmax.f32 %v1001, 0.0
      %v1126 = vmax.f32 %v1006, 0.0
      %v1127 = vmax.f32 %v1009, 0.0
      %v1128 = vmax.f32 %v1014, 0.0
      %v1129 = vmax.f32 %v1017, 0.0
      %v1130 = vmax.f32 %v1022, 0.0
      %v1131 = vmax.f32 %v1025, 0.0
      %v1132 = vmax.f32 %v1030, 0.0
      %v1133 = vmax.f32 %v1033, 0.0
      %v1134 = vmax.f32 %v1038, 0.0
      %v1135 = vmax.f32 %v1041, 0.0
      %v1136 = vmax.f32 %v1046, 0.0
      %v1137 = vmax.f32 %v1049, 0.0
      %v1138 = vmax.f32 %v1054, 0.0
      %v1139 = vmax.f32 %v1057, 0.0
      %v1140 = vmax.f32 %v1062, 0.0
      %v1141 = vmax.f32 %v1065, 0.0
      %v1142 = vmax.f32 %v1070, 0.0
      %v1143 = vmax.f32 %v1073, 0.0
      %v1144 = vmax.f32 %v1078, 0.0
      %v1145 = vmax.f32 %v1081, 0.0
      %v1146 = vmax.f32 %v1086, 0.0
      %v1147 = vmax.f32 %v1089, 0.0
      %v1148 = vmax.f32 %v1094, 0.0
      %v1149 = vmax.f32 %v1097, 0.0
      %v1150 = vmax.f32 %v1102, 0.0
      %v1151 = vmax.f32 %v1105, 0.0
      %v1152 = vmax.f32 %v1110, 0.0
      %v1153 = vmax.f32 %v1113, 0.0
      %v1154 = vmax.f32 %v1118, 0.0
      %v1155 = vmax.f32 %v1121, 0.0
      %v1156 = vpack.c.bf16 %v1125, %v1124
      %v1157 = vpack.c.bf16 %v1127, %v1126
      %v1158 = vpack.c.bf16 %v1129, %v1128
      %v1159 = vpack.c.bf16 %v1131, %v1130
      %v1160 = vpack.c.bf16 %v1133, %v1132
      %v1161 = vpack.c.bf16 %v1135, %v1134
      %v1162 = vpack.c.bf16 %v1137, %v1136
      %v1163 = vpack.c.bf16 %v1139, %v1138
      %v1164 = vpack.c.bf16 %v1141, %v1140
      %v1165 = vpack.c.bf16 %v1143, %v1142
      %v1166 = vpack.c.bf16 %v1145, %v1144
      %v1167 = vpack.c.bf16 %v1147, %v1146
      %v1168 = vpack.c.bf16 %v1149, %v1148
      %v1169 = vpack.c.bf16 %v1151, %v1150
      %v1170 = vpack.c.bf16 %v1153, %v1152
      %v1171 = vpack.c.bf16 %v1155, %v1154
      %v1172 = vld [vmem:[%s7] sm:$0xf]
      %v1173 = vld [vmem:[%s7 + $0x4] sm:$0xf]
      %v1174 = vld [vmem:[%s8] sm:$0x1]
      %v1176 = vlaneseq
      %v1177 = vshrl.u32 %v1176, 7
      %v1178 = vsub.s32 0, %v1177
      %v1179 = vrot.slane %v1174, %v1178
      %v1183 = vunpack.c.l.b16 %v1172
      %v1184 = vunpack.c.l.b16 %v1173
      %v1185 = vpack.c.b16 %v1184, %v1183
      %v1188 = vsel %vm633, %v1156, 0
      %v1191 = vsel %vm633, %v1157, 0
      %v1194 = vsel %vm633, %v1158, 0
      %v1197 = vsel %vm633, %v1159, 0
      %v1200 = vsel %vm633, %v1160, 0
      %v1203 = vsel %vm633, %v1161, 0
      %v1206 = vsel %vm633, %v1162, 0
      %v1209 = vsel %vm633, %v1163, 0
      %v1212 = vsel %vm633, %v1164, 0
      %v1215 = vsel %vm633, %v1165, 0
      %v1218 = vsel %vm633, %v1166, 0
      %v1221 = vsel %vm633, %v1167, 0
      %v1224 = vsel %vm633, %v1168, 0
      %v1227 = vsel %vm633, %v1169, 0
      %v1230 = vsel %vm633, %v1170, 0
      %v1233 = vsel %vm633, %v1171, 0
      %1235 = vmatprep.subr.bf16.mxu0 0
      %1236 = vmatpush1.bf16.msra.mxu0 %v1185
      %1237 = vmatprep.subr.bf16.mxu0 0
      %1238 = vmatpush1.bf16.msra.mxu0 0
      %1239 = vmatprep.subr.bf16.mxu0 0
      %1240 = vmatpush1.bf16.msra.mxu0 0
      %1241 = vmatprep.subr.bf16.mxu0 0
      %1242 = vmatpush1.bf16.msra.mxu0 0
      %1243 = vmatprep.subr.bf16.mxu0 0
      %1244 = vmatpush1.bf16.msra.mxu0 0
      %1245 = vmatprep.subr.bf16.mxu0 0
      %1246 = vmatpush1.bf16.msra.mxu0 0
      %1247 = vmatprep.subr.bf16.mxu0 0
      %1248 = vmatpush1.bf16.msra.mxu0 0
      %1249 = vmatprep.subr.bf16.mxu0 0
      %1250 = vmatpush1.bf16.msra.mxu0 0
      %1251 = vmatprep.subr.bf16.mxu0 0
      %1252 = vmatpush1.bf16.msra.mxu0 0
      %1253 = vmatprep.subr.bf16.mxu0 0
      %1254 = vmatpush1.bf16.msra.mxu0 0
      %1255 = vmatprep.subr.bf16.mxu0 0
      %1256 = vmatpush1.bf16.msra.mxu0 0
      %1257 = vmatprep.subr.bf16.mxu0 0
      %1258 = vmatpush1.bf16.msra.mxu0 0
      %1259 = vmatprep.subr.bf16.mxu0 0
      %1260 = vmatpush1.bf16.msra.mxu0 0
      %1261 = vmatprep.subr.bf16.mxu0 0
      %1262 = vmatpush1.bf16.msra.mxu0 0
      %1263 = vmatprep.subr.bf16.mxu0 0
      %1264 = vmatpush1.bf16.msra.mxu0 0
      %1265 = vmatprep.subr.bf16.mxu0 0
      %1266 = vmatpush1.bf16.msra.mxu0 0
      %1267 = vmatprep.mubr.bf16.mxu0 0
      %1268 = vmatmul.mubr.bf16.gmra.mrb[0].mxu0 %v1188
      %v1269 = vpop.f32.mrb[0].mxu0
      %v1270 = vadd.f32 %v1179, %v1269
      %v1271 = vpop.f32.mrb[0].mxu0
      %v1272 = vpop.f32.mrb[0].mxu0
      %v1273 = vadd.f32 %v1179, %v1272
      %v1274 = vpop.f32.mrb[0].mxu0
      %1275 = vmatprep.mubr.bf16.mxu0 0
      %1276 = vmatmul.mubr.bf16.gmra.mrb[0].mxu0 %v1191
      %v1277 = vpop.f32.mrb[0].mxu0
      %v1278 = vadd.f32 %v1179, %v1277
      %v1279 = vpop.f32.mrb[0].mxu0
      %v1280 = vpop.f32.mrb[0].mxu0
      %v1281 = vadd.f32 %v1179, %v1280
      %v1282 = vpop.f32.mrb[0].mxu0
      %1283 = vmatprep.mubr.bf16.mxu0 0
      %1284 = vmatmul.mubr.bf16.gmra.mrb[0].mxu0 %v1194
      %v1285 = vpop.f32.mrb[0].mxu0
      %v1286 = vadd.f32 %v1179, %v1285
      %v1287 = vpop.f32.mrb[0].mxu0
      %v1288 = vpop.f32.mrb[0].mxu0
      %v1289 = vadd.f32 %v1179, %v1288
      %v1290 = vpop.f32.mrb[0].mxu0
      %1291 = vmatprep.mubr.bf16.mxu0 0
      %1292 = vmatmul.mubr.bf16.gmra.mrb[0].mxu0 %v1197
      %v1293 = vpop.f32.mrb[0].mxu0
      %v1294 = vadd.f32 %v1179, %v1293
      %v1295 = vpop.f32.mrb[0].mxu0
      %v1296 = vpop.f32.mrb[0].mxu0
      %v1297 = vadd.f32 %v1179, %v1296
      %v1298 = vpop.f32.mrb[0].mxu0
      %1299 = vmatprep.mubr.bf16.mxu0 0
      %1300 = vmatmul.mubr.bf16.gmra.mrb[0].mxu0 %v1200
      %v1301 = vpop.f32.mrb[0].mxu0
      %v1302 = vadd.f32 %v1179, %v1301
      %v1303 = vpop.f32.mrb[0].mxu0
      %v1304 = vpop.f32.mrb[0].mxu0
      %v1305 = vadd.f32 %v1179, %v1304
      %v1306 = vpop.f32.mrb[0].mxu0
      %1307 = vmatprep.mubr.bf16.mxu0 0
      %1308 = vmatmul.mubr.bf16.gmra.mrb[0].mxu0 %v1203
      %v1309 = vpop.f32.mrb[0].mxu0
      %v1310 = vadd.f32 %v1179, %v1309
      %v1311 = vpop.f32.mrb[0].mxu0
      %v1312 = vpop.f32.mrb[0].mxu0
      %v1313 = vadd.f32 %v1179, %v1312
      %v1314 = vpop.f32.mrb[0].mxu0
      %1315 = vmatprep.mubr.bf16.mxu0 0
      %1316 = vmatmul.mubr.bf16.gmra.mrb[0].mxu0 %v1206
      %v1317 = vpop.f32.mrb[0].mxu0
      %v1318 = vadd.f32 %v1179, %v1317
      %v1319 = vpop.f32.mrb[0].mxu0
      %v1320 = vpop.f32.mrb[0].mxu0
      %v1321 = vadd.f32 %v1179, %v1320
      %v1322 = vpop.f32.mrb[0].mxu0
      %1323 = vmatprep.mubr.bf16.mxu0 0
      %1324 = vmatmul.mubr.bf16.gmra.mrb[0].mxu0 %v1209
      %v1325 = vpop.f32.mrb[0].mxu0
      %v1326 = vadd.f32 %v1179, %v1325
      %v1327 = vpop.f32.mrb[0].mxu0
      %v1328 = vpop.f32.mrb[0].mxu0
      %v1329 = vadd.f32 %v1179, %v1328
      %v1330 = vpop.f32.mrb[0].mxu0
      %1331 = vmatprep.mubr.bf16.mxu0 0
      %1332 = vmatmul.mubr.bf16.gmra.mrb[0].mxu0 %v1212
      %v1333 = vpop.f32.mrb[0].mxu0
      %v1334 = vadd.f32 %v1179, %v1333
      %v1335 = vpop.f32.mrb[0].mxu0
      %v1336 = vpop.f32.mrb[0].mxu0
      %v1337 = vadd.f32 %v1179, %v1336
      %v1338 = vpop.f32.mrb[0].mxu0
      %1339 = vmatprep.mubr.bf16.mxu0 0
      %1340 = vmatmul.mubr.bf16.gmra.mrb[0].mxu0 %v1215
      %v1341 = vpop.f32.mrb[0].mxu0
      %v1342 = vadd.f32 %v1179, %v1341
      %v1343 = vpop.f32.mrb[0].mxu0
      %v1344 = vpop.f32.mrb[0].mxu0
      %v1345 = vadd.f32 %v1179, %v1344
      %v1346 = vpop.f32.mrb[0].mxu0
      %1347 = vmatprep.mubr.bf16.mxu0 0
      %1348 = vmatmul.mubr.bf16.gmra.mrb[0].mxu0 %v1218
      %v1349 = vpop.f32.mrb[0].mxu0
      %v1350 = vadd.f32 %v1179, %v1349
      %v1351 = vpop.f32.mrb[0].mxu0
      %v1352 = vpop.f32.mrb[0].mxu0
      %v1353 = vadd.f32 %v1179, %v1352
      %v1354 = vpop.f32.mrb[0].mxu0
      %1355 = vmatprep.mubr.bf16.mxu0 0
      %1356 = vmatmul.mubr.bf16.gmra.mrb[0].mxu0 %v1221
      %v1357 = vpop.f32.mrb[0].mxu0
      %v1358 = vadd.f32 %v1179, %v1357
      %v1359 = vpop.f32.mrb[0].mxu0
      %v1360 = vpop.f32.mrb[0].mxu0
      %v1361 = vadd.f32 %v1179, %v1360
      %v1362 = vpop.f32.mrb[0].mxu0
      %1363 = vmatprep.mubr.bf16.mxu0 0
      %1364 = vmatmul.mubr.bf16.gmra.mrb[0].mxu0 %v1224
      %v1365 = vpop.f32.mrb[0].mxu0
      %v1366 = vadd.f32 %v1179, %v1365
      %v1367 = vpop.f32.mrb[0].mxu0
      %v1368 = vpop.f32.mrb[0].mxu0
      %v1369 = vadd.f32 %v1179, %v1368
      %v1370 = vpop.f32.mrb[0].mxu0
      %1371 = vmatprep.mubr.bf16.mxu0 0
      %1372 = vmatmul.mubr.bf16.gmra.mrb[0].mxu0 %v1227
      %v1373 = vpop.f32.mrb[0].mxu0
      %v1374 = vadd.f32 %v1179, %v1373
      %v1375 = vpop.f32.mrb[0].mxu0
      %v1376 = vpop.f32.mrb[0].mxu0
      %v1377 = vadd.f32 %v1179, %v1376
      %v1378 = vpop.f32.mrb[0].mxu0
      %1379 = vmatprep.mubr.bf16.mxu0 0
      %1380 = vmatmul.mubr.bf16.gmra.mrb[0].mxu0 %v1230
      %v1381 = vpop.f32.mrb[0].mxu0
      %v1382 = vadd.f32 %v1179, %v1381
      %v1383 = vpop.f32.mrb[0].mxu0
      %v1384 = vpop.f32.mrb[0].mxu0
      %v1385 = vadd.f32 %v1179, %v1384
      %v1386 = vpop.f32.mrb[0].mxu0
      %1387 = vmatprep.mubr.bf16.mxu0 0
      %1388 = vmatmul.mubr.bf16.gmra.mrb[0].mxu0 %v1233
      %v1389 = vpop.f32.mrb[0].mxu0
      %v1390 = vadd.f32 %v1179, %v1389
      %v1391 = vpop.f32.mrb[0].mxu0
      %v1392 = vpop.f32.mrb[0].mxu0
      %v1393 = vadd.f32 %v1179, %v1392
      %v1394 = vpop.f32.mrb[0].mxu0
      %1395 = vdwg.mxu0
      %1428 = vrot.lane.b32.xlu0 %v1270, 16
      %v1429 = vpop.permute.xlu0 %1428
      %1430 = vrot.lane.b32.xlu0 %v1273, 16
      %v1431 = vpop.permute.xlu0 %1430
      %1432 = vrot.lane.b32.xlu0 %v1278, 16
      %v1433 = vpop.permute.xlu0 %1432
      %1434 = vrot.lane.b32.xlu0 %v1281, 16
      %v1435 = vpop.permute.xlu0 %1434
      %1436 = vrot.lane.b32.xlu0 %v1286, 16
      %v1437 = vpop.permute.xlu0 %1436
      %1438 = vrot.lane.b32.xlu0 %v1289, 16
      %v1439 = vpop.permute.xlu0 %1438
      %1440 = vrot.lane.b32.xlu0 %v1294, 16
      %v1441 = vpop.permute.xlu0 %1440
      %1442 = vrot.lane.b32.xlu0 %v1297, 16
      %v1443 = vpop.permute.xlu0 %1442
      %1444 = vrot.lane.b32.xlu0 %v1302, 16
      %v1445 = vpop.permute.xlu0 %1444
      %1446 = vrot.lane.b32.xlu0 %v1305, 16
      %v1447 = vpop.permute.xlu0 %1446
      %1448 = vrot.lane.b32.xlu0 %v1310, 16
      %v1449 = vpop.permute.xlu0 %1448
      %1450 = vrot.lane.b32.xlu0 %v1313, 16
      %v1451 = vpop.permute.xlu0 %1450
      %1452 = vrot.lane.b32.xlu0 %v1318, 16
      %v1453 = vpop.permute.xlu0 %1452
      %1454 = vrot.lane.b32.xlu0 %v1321, 16
      %v1455 = vpop.permute.xlu0 %1454
      %1456 = vrot.lane.b32.xlu0 %v1326, 16
      %v1457 = vpop.permute.xlu0 %1456
      %1458 = vrot.lane.b32.xlu0 %v1329, 16
      %v1459 = vpop.permute.xlu0 %1458
      %1460 = vrot.lane.b32.xlu0 %v1334, 16
      %v1461 = vpop.permute.xlu0 %1460
      %1462 = vrot.lane.b32.xlu0 %v1337, 16
      %v1463 = vpop.permute.xlu0 %1462
      %1464 = vrot.lane.b32.xlu0 %v1342, 16
      %v1465 = vpop.permute.xlu0 %1464
      %1466 = vrot.lane.b32.xlu0 %v1345, 16
      %v1467 = vpop.permute.xlu0 %1466
      %1468 = vrot.lane.b32.xlu0 %v1350, 16
      %v1469 = vpop.permute.xlu0 %1468
      %1470 = vrot.lane.b32.xlu0 %v1353, 16
      %v1471 = vpop.permute.xlu0 %1470
      %1472 = vrot.lane.b32.xlu0 %v1358, 16
      %v1473 = vpop.permute.xlu0 %1472
      %1474 = vrot.lane.b32.xlu0 %v1361, 16
      %v1475 = vpop.permute.xlu0 %1474
      %1476 = vrot.lane.b32.xlu0 %v1366, 16
      %v1477 = vpop.permute.xlu0 %1476
      %1478 = vrot.lane.b32.xlu0 %v1369, 16
      %v1479 = vpop.permute.xlu0 %1478
      %1480 = vrot.lane.b32.xlu0 %v1374, 16
      %v1481 = vpop.permute.xlu0 %1480
      %1482 = vrot.lane.b32.xlu0 %v1377, 16
      %v1483 = vpop.permute.xlu0 %1482
      %1484 = vrot.lane.b32.xlu0 %v1382, 16
      %v1485 = vpop.permute.xlu0 %1484
      %1486 = vrot.lane.b32.xlu0 %v1385, 16
      %v1487 = vpop.permute.xlu0 %1486
      %1488 = vrot.lane.b32.xlu0 %v1390, 16
      %v1489 = vpop.permute.xlu0 %1488
      %1490 = vrot.lane.b32.xlu0 %v1393, 16
      %v1491 = vpop.permute.xlu0 %1490
      %vm1524 = vcmask 195712
      %1525 = vst.msk [vmem:[%s567] sm:$0xff] %vm1524, %v1429
      %1526 = vst.msk [vmem:[%s567 + $0x8] sm:$0xff] %vm1524, %v1431
      %1527 = vst.msk [vmem:[%s567 + $0x10] sm:$0xff] %vm1524, %v1433
      %1528 = vst.msk [vmem:[%s567 + $0x18] sm:$0xff] %vm1524, %v1435
      %1529 = vst.msk [vmem:[%s567 + $0x20] sm:$0xff] %vm1524, %v1437
      %1530 = vst.msk [vmem:[%s567 + $0x28] sm:$0xff] %vm1524, %v1439
      %1531 = vst.msk [vmem:[%s567 + $0x30] sm:$0xff] %vm1524, %v1441
      %1532 = vst.msk [vmem:[%s567 + $0x38] sm:$0xff] %vm1524, %v1443
      %1533 = vst.msk [vmem:[%s567 + $0x40] sm:$0xff] %vm1524, %v1445
      %1534 = vst.msk [vmem:[%s567 + $0x48] sm:$0xff] %vm1524, %v1447
      %1535 = vst.msk [vmem:[%s567 + $0x50] sm:$0xff] %vm1524, %v1449
      %1536 = vst.msk [vmem:[%s567 + $0x58] sm:$0xff] %vm1524, %v1451
      %1537 = vst.msk [vmem:[%s567 + $0x60] sm:$0xff] %vm1524, %v1453
      %1538 = vst.msk [vmem:[%s567 + $0x68] sm:$0xff] %vm1524, %v1455
      %1539 = vst.msk [vmem:[%s567 + $0x70] sm:$0xff] %vm1524, %v1457
      %1540 = vst.msk [vmem:[%s567 + $0x78] sm:$0xff] %vm1524, %v1459
      %1541 = vst.msk [vmem:[%s567 + $0x80] sm:$0xff] %vm1524, %v1461
      %1542 = vst.msk [vmem:[%s567 + $0x88] sm:$0xff] %vm1524, %v1463
      %1543 = vst.msk [vmem:[%s567 + $0x90] sm:$0xff] %vm1524, %v1465
      %1544 = vst.msk [vmem:[%s567 + $0x98] sm:$0xff] %vm1524, %v1467
      %1545 = vst.msk [vmem:[%s567 + $0xa0] sm:$0xff] %vm1524, %v1469
      %1546 = vst.msk [vmem:[%s567 + $0xa8] sm:$0xff] %vm1524, %v1471
      %1547 = vst.msk [vmem:[%s567 + $0xb0] sm:$0xff] %vm1524, %v1473
      %1548 = vst.msk [vmem:[%s567 + $0xb8] sm:$0xff] %vm1524, %v1475
      %1549 = vst.msk [vmem:[%s567 + $0xc0] sm:$0xff] %vm1524, %v1477
      %1550 = vst.msk [vmem:[%s567 + $0xc8] sm:$0xff] %vm1524, %v1479
      %1551 = vst.msk [vmem:[%s567 + $0xd0] sm:$0xff] %vm1524, %v1481
      %1552 = vst.msk [vmem:[%s567 + $0xd8] sm:$0xff] %vm1524, %v1483
      %1553 = vst.msk [vmem:[%s567 + $0xe0] sm:$0xff] %vm1524, %v1485
      %1554 = vst.msk [vmem:[%s567 + $0xe8] sm:$0xff] %vm1524, %v1487
      %1555 = vst.msk [vmem:[%s567 + $0xf0] sm:$0xff] %vm1524, %v1489
      %1556 = vst.msk [vmem:[%s567 + $0xf8] sm:$0xff] %vm1524, %v1491
      %v1557 = vld [vmem:[%s561] sm:$0xff]
      %v1558 = vld [vmem:[%s561 + $0x8] sm:$0xff]
      %v1559 = vld [vmem:[%s561 + $0x10] sm:$0xff]
      %v1560 = vld [vmem:[%s561 + $0x18] sm:$0xff]
      %v1561 = vld [vmem:[%s561 + $0x20] sm:$0xff]
      %v1562 = vld [vmem:[%s561 + $0x28] sm:$0xff]
      %v1563 = vld [vmem:[%s561 + $0x30] sm:$0xff]
      %v1564 = vld [vmem:[%s561 + $0x38] sm:$0xff]
      %v1565 = vld [vmem:[%s561 + $0x40] sm:$0xff]
      %v1566 = vld [vmem:[%s561 + $0x48] sm:$0xff]
      %v1567 = vld [vmem:[%s561 + $0x50] sm:$0xff]
      %v1568 = vld [vmem:[%s561 + $0x58] sm:$0xff]
      %v1569 = vld [vmem:[%s561 + $0x60] sm:$0xff]
      %v1570 = vld [vmem:[%s561 + $0x68] sm:$0xff]
      %v1571 = vld [vmem:[%s561 + $0x70] sm:$0xff]
      %v1572 = vld [vmem:[%s561 + $0x78] sm:$0xff]
      %v1573 = vld [vmem:[%s561 + $0x80] sm:$0xff]
      %v1574 = vld [vmem:[%s561 + $0x88] sm:$0xff]
      %v1575 = vld [vmem:[%s561 + $0x90] sm:$0xff]
      %v1576 = vld [vmem:[%s561 + $0x98] sm:$0xff]
      %v1577 = vld [vmem:[%s561 + $0xa0] sm:$0xff]
      %v1578 = vld [vmem:[%s561 + $0xa8] sm:$0xff]
      %v1579 = vld [vmem:[%s561 + $0xb0] sm:$0xff]
      %v1580 = vld [vmem:[%s561 + $0xb8] sm:$0xff]
      %v1581 = vld [vmem:[%s561 + $0xc0] sm:$0xff]
      %v1582 = vld [vmem:[%s561 + $0xc8] sm:$0xff]
      %v1583 = vld [vmem:[%s561 + $0xd0] sm:$0xff]
      %v1584 = vld [vmem:[%s561 + $0xd8] sm:$0xff]
      %v1585 = vld [vmem:[%s561 + $0xe0] sm:$0xff]
      %v1586 = vld [vmem:[%s561 + $0xe8] sm:$0xff]
      %v1587 = vld [vmem:[%s561 + $0xf0] sm:$0xff]
      %v1588 = vld [vmem:[%s561 + $0xf8] sm:$0xff]
      %v1589 = vmul.f32 %v1270, 0.5
      %v1590 = vmul.f32 %v1273, 0.5
      %v1591 = vmul.f32 %v1278, 0.5
      %v1592 = vmul.f32 %v1281, 0.5
      %v1593 = vmul.f32 %v1286, 0.5
      %v1594 = vmul.f32 %v1289, 0.5
      %v1595 = vmul.f32 %v1294, 0.5
      %v1596 = vmul.f32 %v1297, 0.5
      %v1597 = vmul.f32 %v1302, 0.5
      %v1598 = vmul.f32 %v1305, 0.5
      %v1599 = vmul.f32 %v1310, 0.5
      %v1600 = vmul.f32 %v1313, 0.5
      %v1601 = vmul.f32 %v1318, 0.5
      %v1602 = vmul.f32 %v1321, 0.5
      %v1603 = vmul.f32 %v1326, 0.5
      %v1604 = vmul.f32 %v1329, 0.5
      %v1605 = vmul.f32 %v1334, 0.5
      %v1606 = vmul.f32 %v1337, 0.5
      %v1607 = vmul.f32 %v1342, 0.5
      %v1608 = vmul.f32 %v1345, 0.5
      %v1609 = vmul.f32 %v1350, 0.5
      %v1610 = vmul.f32 %v1353, 0.5
      %v1611 = vmul.f32 %v1358, 0.5
      %v1612 = vmul.f32 %v1361, 0.5
      %v1613 = vmul.f32 %v1366, 0.5
      %v1614 = vmul.f32 %v1369, 0.5
      %v1615 = vmul.f32 %v1374, 0.5
      %v1616 = vmul.f32 %v1377, 0.5
      %v1617 = vmul.f32 %v1382, 0.5
      %v1618 = vmul.f32 %v1385, 0.5
      %v1619 = vmul.f32 %v1390, 0.5
      %v1620 = vmul.f32 %v1393, 0.5
      %v1621 = vmul.f32 %v1589, 1.442695
      %v1622 = vpow.pop %v1621
      %v1623 = vmul.f32 %v1590, 1.442695
      %v1624 = vpow.pop %v1623
      %v1625 = vmul.f32 %v1591, 1.442695
      %v1626 = vpow.pop %v1625
      %v1627 = vmul.f32 %v1592, 1.442695
      %v1628 = vpow.pop %v1627
      %v1629 = vmul.f32 %v1593, 1.442695
      %v1630 = vpow.pop %v1629
      %v1631 = vmul.f32 %v1594, 1.442695
      %v1632 = vpow.pop %v1631
      %v1633 = vmul.f32 %v1595, 1.442695
      %v1634 = vpow.pop %v1633
      %v1635 = vmul.f32 %v1596, 1.442695
      %v1636 = vpow.pop %v1635
      %v1637 = vmul.f32 %v1597, 1.442695
      %v1638 = vpow.pop %v1637
      %v1639 = vmul.f32 %v1598, 1.442695
      %v1640 = vpow.pop %v1639
      %v1641 = vmul.f32 %v1599, 1.442695
      %v1642 = vpow.pop %v1641
      %v1643 = vmul.f32 %v1600, 1.442695
      %v1644 = vpow.pop %v1643
      %v1645 = vmul.f32 %v1601, 1.442695
      %v1646 = vpow.pop %v1645
      %v1647 = vmul.f32 %v1602, 1.442695
      %v1648 = vpow.pop %v1647
      %v1649 = vmul.f32 %v1603, 1.442695
      %v1650 = vpow.pop %v1649
      %v1651 = vmul.f32 %v1604, 1.442695
      %v1652 = vpow.pop %v1651
      %v1653 = vmul.f32 %v1605, 1.442695
      %v1654 = vpow.pop %v1653
      %v1655 = vmul.f32 %v1606, 1.442695
      %v1656 = vpow.pop %v1655
      %v1657 = vmul.f32 %v1607, 1.442695
      %v1658 = vpow.pop %v1657
      %v1659 = vmul.f32 %v1608, 1.442695
      %v1660 = vpow.pop %v1659
      %v1661 = vmul.f32 %v1609, 1.442695
      %v1662 = vpow.pop %v1661
      %v1663 = vmul.f32 %v1610, 1.442695
      %v1664 = vpow.pop %v1663
      %v1665 = vmul.f32 %v1611, 1.442695
      %v1666 = vpow.pop %v1665
      %v1667 = vmul.f32 %v1612, 1.442695
      %v1668 = vpow.pop %v1667
      %v1669 = vmul.f32 %v1613, 1.442695
      %v1670 = vpow.pop %v1669
      %v1671 = vmul.f32 %v1614, 1.442695
      %v1672 = vpow.pop %v1671
      %v1673 = vmul.f32 %v1615, 1.442695
      %v1674 = vpow.pop %v1673
      %v1675 = vmul.f32 %v1616, 1.442695
      %v1676 = vpow.pop %v1675
      %v1677 = vmul.f32 %v1617, 1.442695
      %v1678 = vpow.pop %v1677
      %v1679 = vmul.f32 %v1618, 1.442695
      %v1680 = vpow.pop %v1679
      %v1681 = vmul.f32 %v1619, 1.442695
      %v1682 = vpow.pop %v1681
      %v1683 = vmul.f32 %v1620, 1.442695
      %v1684 = vpow.pop %v1683
      %1717 = vrot.lane.b32.xlu0 %v1622, 124
      %v1718 = vpop.permute.xlu0 %1717
      %1719 = vrot.lane.b32.xlu0 %v1624, 124
      %v1720 = vpop.permute.xlu0 %1719
      %1721 = vrot.lane.b32.xlu0 %v1626, 124
      %v1722 = vpop.permute.xlu0 %1721
      %1723 = vrot.lane.b32.xlu0 %v1628, 124
      %v1724 = vpop.permute.xlu0 %1723
      %1725 = vrot.lane.b32.xlu0 %v1630, 124
      %v1726 = vpop.permute.xlu0 %1725
      %1727 = vrot.lane.b32.xlu0 %v1632, 124
      %v1728 = vpop.permute.xlu0 %1727
      %1729 = vrot.lane.b32.xlu0 %v1634, 124
      %v1730 = vpop.permute.xlu0 %1729
      %1731 = vrot.lane.b32.xlu0 %v1636, 124
      %v1732 = vpop.permute.xlu0 %1731
      %1733 = vrot.lane.b32.xlu0 %v1638, 124
      %v1734 = vpop.permute.xlu0 %1733
      %1735 = vrot.lane.b32.xlu0 %v1640, 124
      %v1736 = vpop.permute.xlu0 %1735
      %1737 = vrot.lane.b32.xlu0 %v1642, 124
      %v1738 = vpop.permute.xlu0 %1737
      %1739 = vrot.lane.b32.xlu0 %v1644, 124
      %v1740 = vpop.permute.xlu0 %1739
      %1741 = vrot.lane.b32.xlu0 %v1646, 124
      %v1742 = vpop.permute.xlu0 %1741
      %1743 = vrot.lane.b32.xlu0 %v1648, 124
      %v1744 = vpop.permute.xlu0 %1743
      %1745 = vrot.lane.b32.xlu0 %v1650, 124
      %v1746 = vpop.permute.xlu0 %1745
      %1747 = vrot.lane.b32.xlu0 %v1652, 124
      %v1748 = vpop.permute.xlu0 %1747
      %1749 = vrot.lane.b32.xlu0 %v1654, 124
      %v1750 = vpop.permute.xlu0 %1749
      %1751 = vrot.lane.b32.xlu0 %v1656, 124
      %v1752 = vpop.permute.xlu0 %1751
      %1753 = vrot.lane.b32.xlu0 %v1658, 124
      %v1754 = vpop.permute.xlu0 %1753
      %1755 = vrot.lane.b32.xlu0 %v1660, 124
      %v1756 = vpop.permute.xlu0 %1755
      %1757 = vrot.lane.b32.xlu0 %v1662, 124
      %v1758 = vpop.permute.xlu0 %1757
      %1759 = vrot.lane.b32.xlu0 %v1664, 124
      %v1760 = vpop.permute.xlu0 %1759
      %1761 = vrot.lane.b32.xlu0 %v1666, 124
      %v1762 = vpop.permute.xlu0 %1761
      %1763 = vrot.lane.b32.xlu0 %v1668, 124
      %v1764 = vpop.permute.xlu0 %1763
      %1765 = vrot.lane.b32.xlu0 %v1670, 124
      %v1766 = vpop.permute.xlu0 %1765
      %1767 = vrot.lane.b32.xlu0 %v1672, 124
      %v1768 = vpop.permute.xlu0 %1767
      %1769 = vrot.lane.b32.xlu0 %v1674, 124
      %v1770 = vpop.permute.xlu0 %1769
      %1771 = vrot.lane.b32.xlu0 %v1676, 124
      %v1772 = vpop.permute.xlu0 %1771
      %1773 = vrot.lane.b32.xlu0 %v1678, 124
      %v1774 = vpop.permute.xlu0 %1773
      %1775 = vrot.lane.b32.xlu0 %v1680, 124
      %v1776 = vpop.permute.xlu0 %1775
      %1777 = vrot.lane.b32.xlu0 %v1682, 124
      %v1778 = vpop.permute.xlu0 %1777
      %1779 = vrot.lane.b32.xlu0 %v1684, 124
      %v1780 = vpop.permute.xlu0 %1779
      %v1813 = vmul.f32 %v1557, %v1718
      %v1814 = vmul.f32 %v1558, %v1720
      %v1815 = vmul.f32 %v1559, %v1722
      %v1816 = vmul.f32 %v1560, %v1724
      %v1817 = vmul.f32 %v1561, %v1726
      %v1818 = vmul.f32 %v1562, %v1728
      %v1819 = vmul.f32 %v1563, %v1730
      %v1820 = vmul.f32 %v1564, %v1732
      %v1821 = vmul.f32 %v1565, %v1734
      %v1822 = vmul.f32 %v1566, %v1736
      %v1823 = vmul.f32 %v1567, %v1738
      %v1824 = vmul.f32 %v1568, %v1740
      %v1825 = vmul.f32 %v1569, %v1742
      %v1826 = vmul.f32 %v1570, %v1744
      %v1827 = vmul.f32 %v1571, %v1746
      %v1828 = vmul.f32 %v1572, %v1748
      %v1829 = vmul.f32 %v1573, %v1750
      %v1830 = vmul.f32 %v1574, %v1752
      %v1831 = vmul.f32 %v1575, %v1754
      %v1832 = vmul.f32 %v1576, %v1756
      %v1833 = vmul.f32 %v1577, %v1758
      %v1834 = vmul.f32 %v1578, %v1760
      %v1835 = vmul.f32 %v1579, %v1762
      %v1836 = vmul.f32 %v1580, %v1764
      %v1837 = vmul.f32 %v1581, %v1766
      %v1838 = vmul.f32 %v1582, %v1768
      %v1839 = vmul.f32 %v1583, %v1770
      %v1840 = vmul.f32 %v1584, %v1772
      %v1841 = vmul.f32 %v1585, %v1774
      %v1842 = vmul.f32 %v1586, %v1776
      %v1843 = vmul.f32 %v1587, %v1778
      %v1844 = vmul.f32 %v1588, %v1780
      %v1845 = vadd.f32 %v1270, %v1813
      %v1846 = vadd.f32 %v1273, %v1814
      %v1847 = vadd.f32 %v1278, %v1815
      %v1848 = vadd.f32 %v1281, %v1816
      %v1849 = vadd.f32 %v1286, %v1817
      %v1850 = vadd.f32 %v1289, %v1818
      %v1851 = vadd.f32 %v1294, %v1819
      %v1852 = vadd.f32 %v1297, %v1820
      %v1853 = vadd.f32 %v1302, %v1821
      %v1854 = vadd.f32 %v1305, %v1822
      %v1855 = vadd.f32 %v1310, %v1823
      %v1856 = vadd.f32 %v1313, %v1824
      %v1857 = vadd.f32 %v1318, %v1825
      %v1858 = vadd.f32 %v1321, %v1826
      %v1859 = vadd.f32 %v1326, %v1827
      %v1860 = vadd.f32 %v1329, %v1828
      %v1861 = vadd.f32 %v1334, %v1829
      %v1862 = vadd.f32 %v1337, %v1830
      %v1863 = vadd.f32 %v1342, %v1831
      %v1864 = vadd.f32 %v1345, %v1832
      %v1865 = vadd.f32 %v1350, %v1833
      %v1866 = vadd.f32 %v1353, %v1834
      %v1867 = vadd.f32 %v1358, %v1835
      %v1868 = vadd.f32 %v1361, %v1836
      %v1869 = vadd.f32 %v1366, %v1837
      %v1870 = vadd.f32 %v1369, %v1838
      %v1871 = vadd.f32 %v1374, %v1839
      %v1872 = vadd.f32 %v1377, %v1840
      %v1873 = vadd.f32 %v1382, %v1841
      %v1874 = vadd.f32 %v1385, %v1842
      %v1875 = vadd.f32 %v1390, %v1843
      %v1876 = vadd.f32 %v1393, %v1844
      %v1877 = vpack.c.bf16 %v1846, %v1845
      %v1878 = vpack.c.bf16 %v1848, %v1847
      %v1879 = vpack.c.bf16 %v1850, %v1849
      %v1880 = vpack.c.bf16 %v1852, %v1851
      %v1881 = vpack.c.bf16 %v1854, %v1853
      %v1882 = vpack.c.bf16 %v1856, %v1855
      %v1883 = vpack.c.bf16 %v1858, %v1857
      %v1884 = vpack.c.bf16 %v1860, %v1859
      %v1885 = vpack.c.bf16 %v1862, %v1861
      %v1886 = vpack.c.bf16 %v1864, %v1863
      %v1887 = vpack.c.bf16 %v1866, %v1865
      %v1888 = vpack.c.bf16 %v1868, %v1867
      %v1889 = vpack.c.bf16 %v1870, %v1869
      %v1890 = vpack.c.bf16 %v1872, %v1871
      %v1891 = vpack.c.bf16 %v1874, %v1873
      %v1892 = vpack.c.bf16 %v1876, %v1875
      %v1893 = vld [vmem:[%s9] sm:$0x3]
      %v1894 = vld [vmem:[%s555] sm:$0xff]
      %v1895 = vld [vmem:[%s555 + $0x8] sm:$0xff]
      %v1896 = vld [vmem:[%s555 + $0x10] sm:$0xff]
      %v1897 = vld [vmem:[%s555 + $0x18] sm:$0xff]
      %v1898 = vld [vmem:[%s555 + $0x20] sm:$0xff]
      %v1899 = vld [vmem:[%s555 + $0x28] sm:$0xff]
      %v1900 = vld [vmem:[%s555 + $0x30] sm:$0xff]
      %v1901 = vld [vmem:[%s555 + $0x38] sm:$0xff]
      %v1902 = vld [vmem:[%s555 + $0x40] sm:$0xff]
      %v1903 = vld [vmem:[%s555 + $0x48] sm:$0xff]
      %v1904 = vld [vmem:[%s555 + $0x50] sm:$0xff]
      %v1905 = vld [vmem:[%s555 + $0x58] sm:$0xff]
      %v1906 = vld [vmem:[%s555 + $0x60] sm:$0xff]
      %v1907 = vld [vmem:[%s555 + $0x68] sm:$0xff]
      %v1908 = vld [vmem:[%s555 + $0x70] sm:$0xff]
      %v1909 = vld [vmem:[%s555 + $0x78] sm:$0xff]
      %v1910 = vld [vmem:[%s555 + $0x80] sm:$0xff]
      %v1911 = vld [vmem:[%s555 + $0x88] sm:$0xff]
      %v1912 = vld [vmem:[%s555 + $0x90] sm:$0xff]
      %v1913 = vld [vmem:[%s555 + $0x98] sm:$0xff]
      %v1914 = vld [vmem:[%s555 + $0xa0] sm:$0xff]
      %v1915 = vld [vmem:[%s555 + $0xa8] sm:$0xff]
      %v1916 = vld [vmem:[%s555 + $0xb0] sm:$0xff]
      %v1917 = vld [vmem:[%s555 + $0xb8] sm:$0xff]
      %v1918 = vld [vmem:[%s555 + $0xc0] sm:$0xff]
      %v1919 = vld [vmem:[%s555 + $0xc8] sm:$0xff]
      %v1920 = vld [vmem:[%s555 + $0xd0] sm:$0xff]
      %v1921 = vld [vmem:[%s555 + $0xd8] sm:$0xff]
      %v1922 = vld [vmem:[%s555 + $0xe0] sm:$0xff]
      %v1923 = vld [vmem:[%s555 + $0xe8] sm:$0xff]
      %v1924 = vld [vmem:[%s555 + $0xf0] sm:$0xff]
      %v1925 = vld [vmem:[%s555 + $0xf8] sm:$0xff]
      %v1926 = vpack.c.bf16 %v1895, %v1894
      %v1927 = vpack.c.bf16 %v1897, %v1896
      %v1928 = vpack.c.bf16 %v1899, %v1898
      %v1929 = vpack.c.bf16 %v1901, %v1900
      %v1930 = vpack.c.bf16 %v1903, %v1902
      %v1931 = vpack.c.bf16 %v1905, %v1904
      %v1932 = vpack.c.bf16 %v1907, %v1906
      %v1933 = vpack.c.bf16 %v1909, %v1908
      %v1934 = vpack.c.bf16 %v1911, %v1910
      %v1935 = vpack.c.bf16 %v1913, %v1912
      %v1936 = vpack.c.bf16 %v1915, %v1914
      %v1937 = vpack.c.bf16 %v1917, %v1916
      %v1938 = vpack.c.bf16 %v1919, %v1918
      %v1939 = vpack.c.bf16 %v1921, %v1920
      %v1940 = vpack.c.bf16 %v1923, %v1922
      %v1941 = vpack.c.bf16 %v1925, %v1924
      %v1942 = vld [vmem:[%s10] sm:$0x3]
      %vm1943 = vcmask 31744
      %v1945 = vsel %vm1943, %v1926, 0
      %v1948 = vsel %vm1943, %v1927, 0
      %v1951 = vsel %vm1943, %v1928, 0
      %v1954 = vsel %vm1943, %v1929, 0
      %v1957 = vsel %vm1943, %v1930, 0
      %v1960 = vsel %vm1943, %v1931, 0
      %v1963 = vsel %vm1943, %v1932, 0
      %v1966 = vsel %vm1943, %v1933, 0
      %v1969 = vsel %vm1943, %v1934, 0
      %v1972 = vsel %vm1943, %v1935, 0
      %v1975 = vsel %vm1943, %v1936, 0
      %v1978 = vsel %vm1943, %v1937, 0
      %v1981 = vsel %vm1943, %v1938, 0
      %v1984 = vsel %vm1943, %v1939, 0
      %v1987 = vsel %vm1943, %v1940, 0
      %v1990 = vsel %vm1943, %v1941, 0
      %vm1992 = vcmask 1041408
      %v1994 = vsel %vm1992, %v1942, 0
      %1996 = vmatprep.subr.bf16.mxu0 0
      %1997 = vmatpush1.bf16.msra.mxu0 %v1994
      %1998 = vmatprep.subr.bf16.mxu0 0
      %1999 = vmatpush1.bf16.msra.mxu0 0
      %2000 = vmatprep.subr.bf16.mxu0 0
      %2001 = vmatpush1.bf16.msra.mxu0 0
      %2002 = vmatprep.subr.bf16.mxu0 0
      %2003 = vmatpush1.bf16.msra.mxu0 0
      %2004 = vmatprep.subr.bf16.mxu0 0
      %2005 = vmatpush1.bf16.msra.mxu0 0
      %2006 = vmatprep.subr.bf16.mxu0 0
      %2007 = vmatpush1.bf16.msra.mxu0 0
      %2008 = vmatprep.subr.bf16.mxu0 0
      %2009 = vmatpush1.bf16.msra.mxu0 0
      %2010 = vmatprep.subr.bf16.mxu0 0
      %2011 = vmatpush1.bf16.msra.mxu0 0
      %2012 = vmatprep.subr.bf16.mxu0 0
      %2013 = vmatpush1.bf16.msra.mxu0 0
      %2014 = vmatprep.subr.bf16.mxu0 0
      %2015 = vmatpush1.bf16.msra.mxu0 0
      %2016 = vmatprep.subr.bf16.mxu0 0
      %2017 = vmatpush1.bf16.msra.mxu0 0
      %2018 = vmatprep.subr.bf16.mxu0 0
      %2019 = vmatpush1.bf16.msra.mxu0 0
      %2020 = vmatprep.subr.bf16.mxu0 0
      %2021 = vmatpush1.bf16.msra.mxu0 0
      %2022 = vmatprep.subr.bf16.mxu0 0
      %2023 = vmatpush1.bf16.msra.mxu0 0
      %2024 = vmatprep.subr.bf16.mxu0 0
      %2025 = vmatpush1.bf16.msra.mxu0 0
      %2026 = vmatprep.subr.bf16.mxu0 0
      %2027 = vmatpush1.bf16.msra.mxu0 0
      %2028 = vmatprep.mubr.bf16.mxu0 0
      %2029 = vmatmul.mubr.bf16.gmra.mrb[0].mxu0 %v1945
      %v2030 = vpop.f32.mrb[0].mxu0
      %v2031 = vadd.f32 0.0, %v2030
      %v2032 = vpop.f32.mrb[0].mxu0
      %v2033 = vpop.f32.mrb[0].mxu0
      %v2034 = vadd.f32 0.0, %v2033
      %v2035 = vpop.f32.mrb[0].mxu0
      %2036 = vmatprep.mubr.bf16.mxu0 0
      %2037 = vmatmul.mubr.bf16.gmra.mrb[0].mxu0 %v1948
      %v2038 = vpop.f32.mrb[0].mxu0
      %v2039 = vadd.f32 0.0, %v2038
      %v2040 = vpop.f32.mrb[0].mxu0
      %v2041 = vpop.f32.mrb[0].mxu0
      %v2042 = vadd.f32 0.0, %v2041
      %v2043 = vpop.f32.mrb[0].mxu0
      %2044 = vmatprep.mubr.bf16.mxu0 0
      %2045 = vmatmul.mubr.bf16.gmra.mrb[0].mxu0 %v1951
      %v2046 = vpop.f32.mrb[0].mxu0
      %v2047 = vadd.f32 0.0, %v2046
      %v2048 = vpop.f32.mrb[0].mxu0
      %v2049 = vpop.f32.mrb[0].mxu0
      %v2050 = vadd.f32 0.0, %v2049
      %v2051 = vpop.f32.mrb[0].mxu0
      %2052 = vmatprep.mubr.bf16.mxu0 0
      %2053 = vmatmul.mubr.bf16.gmra.mrb[0].mxu0 %v1954
      %v2054 = vpop.f32.mrb[0].mxu0
      %v2055 = vadd.f32 0.0, %v2054
      %v2056 = vpop.f32.mrb[0].mxu0
      %v2057 = vpop.f32.mrb[0].mxu0
      %v2058 = vadd.f32 0.0, %v2057
      %v2059 = vpop.f32.mrb[0].mxu0
      %2060 = vmatprep.mubr.bf16.mxu0 0
      %2061 = vmatmul.mubr.bf16.gmra.mrb[0].mxu0 %v1957
      %v2062 = vpop.f32.mrb[0].mxu0
      %v2063 = vadd.f32 0.0, %v2062
      %v2064 = vpop.f32.mrb[0].mxu0
      %v2065 = vpop.f32.mrb[0].mxu0
      %v2066 = vadd.f32 0.0, %v2065
      %v2067 = vpop.f32.mrb[0].mxu0
      %2068 = vmatprep.mubr.bf16.mxu0 0
      %2069 = vmatmul.mubr.bf16.gmra.mrb[0].mxu0 %v1960
      %v2070 = vpop.f32.mrb[0].mxu0
      %v2071 = vadd.f32 0.0, %v2070
      %v2072 = vpop.f32.mrb[0].mxu0
      %v2073 = vpop.f32.mrb[0].mxu0
      %v2074 = vadd.f32 0.0, %v2073
      %v2075 = vpop.f32.mrb[0].mxu0
      %2076 = vmatprep.mubr.bf16.mxu0 0
      %2077 = vmatmul.mubr.bf16.gmra.mrb[0].mxu0 %v1963
      %v2078 = vpop.f32.mrb[0].mxu0
      %v2079 = vadd.f32 0.0, %v2078
      %v2080 = vpop.f32.mrb[0].mxu0
      %v2081 = vpop.f32.mrb[0].mxu0
      %v2082 = vadd.f32 0.0, %v2081
      %v2083 = vpop.f32.mrb[0].mxu0
      %2084 = vmatprep.mubr.bf16.mxu0 0
      %2085 = vmatmul.mubr.bf16.gmra.mrb[0].mxu0 %v1966
      %v2086 = vpop.f32.mrb[0].mxu0
      %v2087 = vadd.f32 0.0, %v2086
      %v2088 = vpop.f32.mrb[0].mxu0
      %v2089 = vpop.f32.mrb[0].mxu0
      %v2090 = vadd.f32 0.0, %v2089
      %v2091 = vpop.f32.mrb[0].mxu0
      %2092 = vmatprep.mubr.bf16.mxu0 0
      %2093 = vmatmul.mubr.bf16.gmra.mrb[0].mxu0 %v1969
      %v2094 = vpop.f32.mrb[0].mxu0
      %v2095 = vadd.f32 0.0, %v2094
      %v2096 = vpop.f32.mrb[0].mxu0
      %v2097 = vpop.f32.mrb[0].mxu0
      %v2098 = vadd.f32 0.0, %v2097
      %v2099 = vpop.f32.mrb[0].mxu0
      %2100 = vmatprep.mubr.bf16.mxu0 0
      %2101 = vmatmul.mubr.bf16.gmra.mrb[0].mxu0 %v1972
      %v2102 = vpop.f32.mrb[0].mxu0
      %v2103 = vadd.f32 0.0, %v2102
      %v2104 = vpop.f32.mrb[0].mxu0
      %v2105 = vpop.f32.mrb[0].mxu0
      %v2106 = vadd.f32 0.0, %v2105
      %v2107 = vpop.f32.mrb[0].mxu0
      %2108 = vmatprep.mubr.bf16.mxu0 0
      %2109 = vmatmul.mubr.bf16.gmra.mrb[0].mxu0 %v1975
      %v2110 = vpop.f32.mrb[0].mxu0
      %v2111 = vadd.f32 0.0, %v2110
      %v2112 = vpop.f32.mrb[0].mxu0
      %v2113 = vpop.f32.mrb[0].mxu0
      %v2114 = vadd.f32 0.0, %v2113
      %v2115 = vpop.f32.mrb[0].mxu0
      %2116 = vmatprep.mubr.bf16.mxu0 0
      %2117 = vmatmul.mubr.bf16.gmra.mrb[0].mxu0 %v1978
      %v2118 = vpop.f32.mrb[0].mxu0
      %v2119 = vadd.f32 0.0, %v2118
      %v2120 = vpop.f32.mrb[0].mxu0
      %v2121 = vpop.f32.mrb[0].mxu0
      %v2122 = vadd.f32 0.0, %v2121
      %v2123 = vpop.f32.mrb[0].mxu0
      %2124 = vmatprep.mubr.bf16.mxu0 0
      %2125 = vmatmul.mubr.bf16.gmra.mrb[0].mxu0 %v1981
      %v2126 = vpop.f32.mrb[0].mxu0
      %v2127 = vadd.f32 0.0, %v2126
      %v2128 = vpop.f32.mrb[0].mxu0
      %v2129 = vpop.f32.mrb[0].mxu0
      %v2130 = vadd.f32 0.0, %v2129
      %v2131 = vpop.f32.mrb[0].mxu0
      %2132 = vmatprep.mubr.bf16.mxu0 0
      %2133 = vmatmul.mubr.bf16.gmra.mrb[0].mxu0 %v1984
      %v2134 = vpop.f32.mrb[0].mxu0
      %v2135 = vadd.f32 0.0, %v2134
      %v2136 = vpop.f32.mrb[0].mxu0
      %v2137 = vpop.f32.mrb[0].mxu0
      %v2138 = vadd.f32 0.0, %v2137
      %v2139 = vpop.f32.mrb[0].mxu0
      %2140 = vmatprep.mubr.bf16.mxu0 0
      %2141 = vmatmul.mubr.bf16.gmra.mrb[0].mxu0 %v1987
      %v2142 = vpop.f32.mrb[0].mxu0
      %v2143 = vadd.f32 0.0, %v2142
      %v2144 = vpop.f32.mrb[0].mxu0
      %v2145 = vpop.f32.mrb[0].mxu0
      %v2146 = vadd.f32 0.0, %v2145
      %v2147 = vpop.f32.mrb[0].mxu0
      %2148 = vmatprep.mubr.bf16.mxu0 0
      %2149 = vmatmul.mubr.bf16.gmra.mrb[0].mxu0 %v1990
      %v2150 = vpop.f32.mrb[0].mxu0
      %v2151 = vadd.f32 0.0, %v2150
      %v2152 = vpop.f32.mrb[0].mxu0
      %v2153 = vpop.f32.mrb[0].mxu0
      %v2154 = vadd.f32 0.0, %v2153
      %v2155 = vpop.f32.mrb[0].mxu0
      %2156 = vdwg.mxu0
      %v2158 = vsel %vm1943, %v1877, 0
      %v2161 = vsel %vm1943, %v1878, 0
      %v2164 = vsel %vm1943, %v1879, 0
      %v2167 = vsel %vm1943, %v1880, 0
      %v2170 = vsel %vm1943, %v1881, 0
      %v2173 = vsel %vm1943, %v1882, 0
      %v2176 = vsel %vm1943, %v1883, 0
      %v2179 = vsel %vm1943, %v1884, 0
      %v2182 = vsel %vm1943, %v1885, 0
      %v2185 = vsel %vm1943, %v1886, 0
      %v2188 = vsel %vm1943, %v1887, 0
      %v2191 = vsel %vm1943, %v1888, 0
      %v2194 = vsel %vm1943, %v1889, 0
      %v2197 = vsel %vm1943, %v1890, 0
      %v2200 = vsel %vm1943, %v1891, 0
      %v2203 = vsel %vm1943, %v1892, 0
      %v2206 = vsel %vm1992, %v1893, 0
      %2208 = vmatprep.subr.bf16.mxu0 0
      %2209 = vmatpush1.bf16.msra.mxu0 %v2206
      %2210 = vmatprep.subr.bf16.mxu0 0
      %2211 = vmatpush1.bf16.msra.mxu0 0
      %2212 = vmatprep.subr.bf16.mxu0 0
      %2213 = vmatpush1.bf16.msra.mxu0 0
      %2214 = vmatprep.subr.bf16.mxu0 0
      %2215 = vmatpush1.bf16.msra.mxu0 0
      %2216 = vmatprep.subr.bf16.mxu0 0
      %2217 = vmatpush1.bf16.msra.mxu0 0
      %2218 = vmatprep.subr.bf16.mxu0 0
      %2219 = vmatpush1.bf16.msra.mxu0 0
      %2220 = vmatprep.subr.bf16.mxu0 0
      %2221 = vmatpush1.bf16.msra.mxu0 0
      %2222 = vmatprep.subr.bf16.mxu0 0
      %2223 = vmatpush1.bf16.msra.mxu0 0
      %2224 = vmatprep.subr.bf16.mxu0 0
      %2225 = vmatpush1.bf16.msra.mxu0 0
      %2226 = vmatprep.subr.bf16.mxu0 0
      %2227 = vmatpush1.bf16.msra.mxu0 0
      %2228 = vmatprep.subr.bf16.mxu0 0
      %2229 = vmatpush1.bf16.msra.mxu0 0
      %2230 = vmatprep.subr.bf16.mxu0 0
      %2231 = vmatpush1.bf16.msra.mxu0 0
      %2232 = vmatprep.subr.bf16.mxu0 0
      %2233 = vmatpush1.bf16.msra.mxu0 0
      %2234 = vmatprep.subr.bf16.mxu0 0
      %2235 = vmatpush1.bf16.msra.mxu0 0
      %2236 = vmatprep.subr.bf16.mxu0 0
      %2237 = vmatpush1.bf16.msra.mxu0 0
      %2238 = vmatprep.subr.bf16.mxu0 0
      %2239 = vmatpush1.bf16.msra.mxu0 0
      %2240 = vmatprep.mubr.bf16.mxu0 0
      %2241 = vmatmul.mubr.bf16.gmra.mrb[0].mxu0 %v2158
      %v2242 = vpop.f32.mrb[0].mxu0
      %v2243 = vadd.f32 %v2031, %v2242
      %v2244 = vpop.f32.mrb[0].mxu0
      %v2245 = vpop.f32.mrb[0].mxu0
      %v2246 = vadd.f32 %v2034, %v2245
      %v2247 = vpop.f32.mrb[0].mxu0
      %2248 = vmatprep.mubr.bf16.mxu0 0
      %2249 = vmatmul.mubr.bf16.gmra.mrb[0].mxu0 %v2161
      %v2250 = vpop.f32.mrb[0].mxu0
      %v2251 = vadd.f32 %v2039, %v2250
      %v2252 = vpop.f32.mrb[0].mxu0
      %v2253 = vpop.f32.mrb[0].mxu0
      %v2254 = vadd.f32 %v2042, %v2253
      %v2255 = vpop.f32.mrb[0].mxu0
      %2256 = vmatprep.mubr.bf16.mxu0 0
      %2257 = vmatmul.mubr.bf16.gmra.mrb[0].mxu0 %v2164
      %v2258 = vpop.f32.mrb[0].mxu0
      %v2259 = vadd.f32 %v2047, %v2258
      %v2260 = vpop.f32.mrb[0].mxu0
      %v2261 = vpop.f32.mrb[0].mxu0
      %v2262 = vadd.f32 %v2050, %v2261
      %v2263 = vpop.f32.mrb[0].mxu0
      %2264 = vmatprep.mubr.bf16.mxu0 0
      %2265 = vmatmul.mubr.bf16.gmra.mrb[0].mxu0 %v2167
      %v2266 = vpop.f32.mrb[0].mxu0
      %v2267 = vadd.f32 %v2055, %v2266
      %v2268 = vpop.f32.mrb[0].mxu0
      %v2269 = vpop.f32.mrb[0].mxu0
      %v2270 = vadd.f32 %v2058, %v2269
      %v2271 = vpop.f32.mrb[0].mxu0
      %2272 = vmatprep.mubr.bf16.mxu0 0
      %2273 = vmatmul.mubr.bf16.gmra.mrb[0].mxu0 %v2170
      %v2274 = vpop.f32.mrb[0].mxu0
      %v2275 = vadd.f32 %v2063, %v2274
      %v2276 = vpop.f32.mrb[0].mxu0
      %v2277 = vpop.f32.mrb[0].mxu0
      %v2278 = vadd.f32 %v2066, %v2277
      %v2279 = vpop.f32.mrb[0].mxu0
      %2280 = vmatprep.mubr.bf16.mxu0 0
      %2281 = vmatmul.mubr.bf16.gmra.mrb[0].mxu0 %v2173
      %v2282 = vpop.f32.mrb[0].mxu0
      %v2283 = vadd.f32 %v2071, %v2282
      %v2284 = vpop.f32.mrb[0].mxu0
      %v2285 = vpop.f32.mrb[0].mxu0
      %v2286 = vadd.f32 %v2074, %v2285
      %v2287 = vpop.f32.mrb[0].mxu0
      %2288 = vmatprep.mubr.bf16.mxu0 0
      %2289 = vmatmul.mubr.bf16.gmra.mrb[0].mxu0 %v2176
      %v2290 = vpop.f32.mrb[0].mxu0
      %v2291 = vadd.f32 %v2079, %v2290
      %v2292 = vpop.f32.mrb[0].mxu0
      %v2293 = vpop.f32.mrb[0].mxu0
      %v2294 = vadd.f32 %v2082, %v2293
      %v2295 = vpop.f32.mrb[0].mxu0
      %2296 = vmatprep.mubr.bf16.mxu0 0
      %2297 = vmatmul.mubr.bf16.gmra.mrb[0].mxu0 %v2179
      %v2298 = vpop.f32.mrb[0].mxu0
      %v2299 = vadd.f32 %v2087, %v2298
      %v2300 = vpop.f32.mrb[0].mxu0
      %v2301 = vpop.f32.mrb[0].mxu0
      %v2302 = vadd.f32 %v2090, %v2301
      %v2303 = vpop.f32.mrb[0].mxu0
      %2304 = vmatprep.mubr.bf16.mxu0 0
      %2305 = vmatmul.mubr.bf16.gmra.mrb[0].mxu0 %v2182
      %v2306 = vpop.f32.mrb[0].mxu0
      %v2307 = vadd.f32 %v2095, %v2306
      %v2308 = vpop.f32.mrb[0].mxu0
      %v2309 = vpop.f32.mrb[0].mxu0
      %v2310 = vadd.f32 %v2098, %v2309
      %v2311 = vpop.f32.mrb[0].mxu0
      %2312 = vmatprep.mubr.bf16.mxu0 0
      %2313 = vmatmul.mubr.bf16.gmra.mrb[0].mxu0 %v2185
      %v2314 = vpop.f32.mrb[0].mxu0
      %v2315 = vadd.f32 %v2103, %v2314
      %v2316 = vpop.f32.mrb[0].mxu0
      %v2317 = vpop.f32.mrb[0].mxu0
      %v2318 = vadd.f32 %v2106, %v2317
      %v2319 = vpop.f32.mrb[0].mxu0
      %2320 = vmatprep.mubr.bf16.mxu0 0
      %2321 = vmatmul.mubr.bf16.gmra.mrb[0].mxu0 %v2188
      %v2322 = vpop.f32.mrb[0].mxu0
      %v2323 = vadd.f32 %v2111, %v2322
      %v2324 = vpop.f32.mrb[0].mxu0
      %v2325 = vpop.f32.mrb[0].mxu0
      %v2326 = vadd.f32 %v2114, %v2325
      %v2327 = vpop.f32.mrb[0].mxu0
      %2328 = vmatprep.mubr.bf16.mxu0 0
      %2329 = vmatmul.mubr.bf16.gmra.mrb[0].mxu0 %v2191
      %v2330 = vpop.f32.mrb[0].mxu0
      %v2331 = vadd.f32 %v2119, %v2330
      %v2332 = vpop.f32.mrb[0].mxu0
      %v2333 = vpop.f32.mrb[0].mxu0
      %v2334 = vadd.f32 %v2122, %v2333
      %v2335 = vpop.f32.mrb[0].mxu0
      %2336 = vmatprep.mubr.bf16.mxu0 0
      %2337 = vmatmul.mubr.bf16.gmra.mrb[0].mxu0 %v2194
      %v2338 = vpop.f32.mrb[0].mxu0
      %v2339 = vadd.f32 %v2127, %v2338
      %v2340 = vpop.f32.mrb[0].mxu0
      %v2341 = vpop.f32.mrb[0].mxu0
      %v2342 = vadd.f32 %v2130, %v2341
      %v2343 = vpop.f32.mrb[0].mxu0
      %2344 = vmatprep.mubr.bf16.mxu0 0
      %2345 = vmatmul.mubr.bf16.gmra.mrb[0].mxu0 %v2197
      %v2346 = vpop.f32.mrb[0].mxu0
      %v2347 = vadd.f32 %v2135, %v2346
      %v2348 = vpop.f32.mrb[0].mxu0
      %v2349 = vpop.f32.mrb[0].mxu0
      %v2350 = vadd.f32 %v2138, %v2349
      %v2351 = vpop.f32.mrb[0].mxu0
      %2352 = vmatprep.mubr.bf16.mxu0 0
      %2353 = vmatmul.mubr.bf16.gmra.mrb[0].mxu0 %v2200
      %v2354 = vpop.f32.mrb[0].mxu0
      %v2355 = vadd.f32 %v2143, %v2354
      %v2356 = vpop.f32.mrb[0].mxu0
      %v2357 = vpop.f32.mrb[0].mxu0
      %v2358 = vadd.f32 %v2146, %v2357
      %v2359 = vpop.f32.mrb[0].mxu0
      %2360 = vmatprep.mubr.bf16.mxu0 0
      %2361 = vmatmul.mubr.bf16.gmra.mrb[0].mxu0 %v2203
      %v2362 = vpop.f32.mrb[0].mxu0
      %v2363 = vadd.f32 %v2151, %v2362
      %v2364 = vpop.f32.mrb[0].mxu0
      %v2365 = vpop.f32.mrb[0].mxu0
      %v2366 = vadd.f32 %v2154, %v2365
      %v2367 = vpop.f32.mrb[0].mxu0
      %2368 = vdwg.mxu0
      %v2369 = vld [vmem:[%s11] sm:$0x1]
      %v2371 = vlaneseq
      %v2372 = vshrl.u32 %v2371, 7
      %v2373 = vsub.s32 0, %v2372
      %v2374 = vrot.slane %v2369, %v2373
      %v2376 = vadd.f32 %v2243, %v2374
      %v2377 = vadd.f32 %v2246, %v2374
      %v2378 = vadd.f32 %v2251, %v2374
      %v2379 = vadd.f32 %v2254, %v2374
      %v2380 = vadd.f32 %v2259, %v2374
      %v2381 = vadd.f32 %v2262, %v2374
      %v2382 = vadd.f32 %v2267, %v2374
      %v2383 = vadd.f32 %v2270, %v2374
      %v2384 = vadd.f32 %v2275, %v2374
      %v2385 = vadd.f32 %v2278, %v2374
      %v2386 = vadd.f32 %v2283, %v2374
      %v2387 = vadd.f32 %v2286, %v2374
      %v2388 = vadd.f32 %v2291, %v2374
      %v2389 = vadd.f32 %v2294, %v2374
      %v2390 = vadd.f32 %v2299, %v2374
      %v2391 = vadd.f32 %v2302, %v2374
      %v2392 = vadd.f32 %v2307, %v2374
      %v2393 = vadd.f32 %v2310, %v2374
      %v2394 = vadd.f32 %v2315, %v2374
      %v2395 = vadd.f32 %v2318, %v2374
      %v2396 = vadd.f32 %v2323, %v2374
      %v2397 = vadd.f32 %v2326, %v2374
      %v2398 = vadd.f32 %v2331, %v2374
      %v2399 = vadd.f32 %v2334, %v2374
      %v2400 = vadd.f32 %v2339, %v2374
      %v2401 = vadd.f32 %v2342, %v2374
      %v2402 = vadd.f32 %v2347, %v2374
      %v2403 = vadd.f32 %v2350, %v2374
      %v2404 = vadd.f32 %v2355, %v2374
      %v2405 = vadd.f32 %v2358, %v2374
      %v2406 = vadd.f32 %v2363, %v2374
      %v2407 = vadd.f32 %v2366, %v2374
      %v2408 = vmax.f32 %v2376, 0.0
      %v2409 = vmax.f32 %v2377, 0.0
      %v2410 = vmax.f32 %v2378, 0.0
      %v2411 = vmax.f32 %v2379, 0.0
      %v2412 = vmax.f32 %v2380, 0.0
      %v2413 = vmax.f32 %v2381, 0.0
      %v2414 = vmax.f32 %v2382, 0.0
      %v2415 = vmax.f32 %v2383, 0.0
      %v2416 = vmax.f32 %v2384, 0.0
      %v2417 = vmax.f32 %v2385, 0.0
      %v2418 = vmax.f32 %v2386, 0.0
      %v2419 = vmax.f32 %v2387, 0.0
      %v2420 = vmax.f32 %v2388, 0.0
      %v2421 = vmax.f32 %v2389, 0.0
      %v2422 = vmax.f32 %v2390, 0.0
      %v2423 = vmax.f32 %v2391, 0.0
      %v2424 = vmax.f32 %v2392, 0.0
      %v2425 = vmax.f32 %v2393, 0.0
      %v2426 = vmax.f32 %v2394, 0.0
      %v2427 = vmax.f32 %v2395, 0.0
      %v2428 = vmax.f32 %v2396, 0.0
      %v2429 = vmax.f32 %v2397, 0.0
      %v2430 = vmax.f32 %v2398, 0.0
      %v2431 = vmax.f32 %v2399, 0.0
      %v2432 = vmax.f32 %v2400, 0.0
      %v2433 = vmax.f32 %v2401, 0.0
      %v2434 = vmax.f32 %v2402, 0.0
      %v2435 = vmax.f32 %v2403, 0.0
      %v2436 = vmax.f32 %v2404, 0.0
      %v2437 = vmax.f32 %v2405, 0.0
      %v2438 = vmax.f32 %v2406, 0.0
      %v2439 = vmax.f32 %v2407, 0.0
      %v2440 = vpack.c.bf16 %v2409, %v2408
      %v2441 = vpack.c.bf16 %v2411, %v2410
      %v2442 = vpack.c.bf16 %v2413, %v2412
      %v2443 = vpack.c.bf16 %v2415, %v2414
      %v2444 = vpack.c.bf16 %v2417, %v2416
      %v2445 = vpack.c.bf16 %v2419, %v2418
      %v2446 = vpack.c.bf16 %v2421, %v2420
      %v2447 = vpack.c.bf16 %v2423, %v2422
      %v2448 = vpack.c.bf16 %v2425, %v2424
      %v2449 = vpack.c.bf16 %v2427, %v2426
      %v2450 = vpack.c.bf16 %v2429, %v2428
      %v2451 = vpack.c.bf16 %v2431, %v2430
      %v2452 = vpack.c.bf16 %v2433, %v2432
      %v2453 = vpack.c.bf16 %v2435, %v2434
      %v2454 = vpack.c.bf16 %v2437, %v2436
      %v2455 = vpack.c.bf16 %v2439, %v2438
      %v2456 = vld [vmem:[%s12] sm:$0xf]
      %v2457 = vld [vmem:[%s12 + $0x4] sm:$0xf]
      %v2458 = vld [vmem:[%s13] sm:$0x1]
      %v2460 = vlaneseq
      %v2461 = vshrl.u32 %v2460, 7
      %v2462 = vsub.s32 0, %v2461
      %v2463 = vrot.slane %v2458, %v2462
      %v2467 = vunpack.c.l.b16 %v2456
      %v2468 = vunpack.c.l.b16 %v2457
      %v2469 = vpack.c.b16 %v2468, %v2467
      %v2472 = vsel %vm633, %v2440, 0
      %v2475 = vsel %vm633, %v2441, 0
      %v2478 = vsel %vm633, %v2442, 0
      %v2481 = vsel %vm633, %v2443, 0
      %v2484 = vsel %vm633, %v2444, 0
      %v2487 = vsel %vm633, %v2445, 0
      %v2490 = vsel %vm633, %v2446, 0
      %v2493 = vsel %vm633, %v2447, 0
      %v2496 = vsel %vm633, %v2448, 0
      %v2499 = vsel %vm633, %v2449, 0
      %v2502 = vsel %vm633, %v2450, 0
      %v2505 = vsel %vm633, %v2451, 0
      %v2508 = vsel %vm633, %v2452, 0
      %v2511 = vsel %vm633, %v2453, 0
      %v2514 = vsel %vm633, %v2454, 0
      %v2517 = vsel %vm633, %v2455, 0
      %2519 = vmatprep.subr.bf16.mxu0 0
      %2520 = vmatpush1.bf16.msra.mxu0 %v2469
      %2521 = vmatprep.subr.bf16.mxu0 0
      %2522 = vmatpush1.bf16.msra.mxu0 0
      %2523 = vmatprep.subr.bf16.mxu0 0
      %2524 = vmatpush1.bf16.msra.mxu0 0
      %2525 = vmatprep.subr.bf16.mxu0 0
      %2526 = vmatpush1.bf16.msra.mxu0 0
      %2527 = vmatprep.subr.bf16.mxu0 0
      %2528 = vmatpush1.bf16.msra.mxu0 0
      %2529 = vmatprep.subr.bf16.mxu0 0
      %2530 = vmatpush1.bf16.msra.mxu0 0
      %2531 = vmatprep.subr.bf16.mxu0 0
      %2532 = vmatpush1.bf16.msra.mxu0 0
      %2533 = vmatprep.subr.bf16.mxu0 0
      %2534 = vmatpush1.bf16.msra.mxu0 0
      %2535 = vmatprep.subr.bf16.mxu0 0
      %2536 = vmatpush1.bf16.msra.mxu0 0
      %2537 = vmatprep.subr.bf16.mxu0 0
      %2538 = vmatpush1.bf16.msra.mxu0 0
      %2539 = vmatprep.subr.bf16.mxu0 0
      %2540 = vmatpush1.bf16.msra.mxu0 0
      %2541 = vmatprep.subr.bf16.mxu0 0
      %2542 = vmatpush1.bf16.msra.mxu0 0
      %2543 = vmatprep.subr.bf16.mxu0 0
      %2544 = vmatpush1.bf16.msra.mxu0 0
      %2545 = vmatprep.subr.bf16.mxu0 0
      %2546 = vmatpush1.bf16.msra.mxu0 0
      %2547 = vmatprep.subr.bf16.mxu0 0
      %2548 = vmatpush1.bf16.msra.mxu0 0
      %2549 = vmatprep.subr.bf16.mxu0 0
      %2550 = vmatpush1.bf16.msra.mxu0 0
      %2551 = vmatprep.mubr.bf16.mxu0 0
      %2552 = vmatmul.mubr.bf16.gmra.mrb[0].mxu0 %v2472
      %v2553 = vpop.f32.mrb[0].mxu0
      %v2554 = vadd.f32 %v2463, %v2553
      %v2555 = vpop.f32.mrb[0].mxu0
      %v2556 = vpop.f32.mrb[0].mxu0
      %v2557 = vadd.f32 %v2463, %v2556
      %v2558 = vpop.f32.mrb[0].mxu0
      %2559 = vmatprep.mubr.bf16.mxu0 0
      %2560 = vmatmul.mubr.bf16.gmra.mrb[0].mxu0 %v2475
      %v2561 = vpop.f32.mrb[0].mxu0
      %v2562 = vadd.f32 %v2463, %v2561
      %v2563 = vpop.f32.mrb[0].mxu0
      %v2564 = vpop.f32.mrb[0].mxu0
      %v2565 = vadd.f32 %v2463, %v2564
      %v2566 = vpop.f32.mrb[0].mxu0
      %2567 = vmatprep.mubr.bf16.mxu0 0
      %2568 = vmatmul.mubr.bf16.gmra.mrb[0].mxu0 %v2478
      %v2569 = vpop.f32.mrb[0].mxu0
      %v2570 = vadd.f32 %v2463, %v2569
      %v2571 = vpop.f32.mrb[0].mxu0
      %v2572 = vpop.f32.mrb[0].mxu0
      %v2573 = vadd.f32 %v2463, %v2572
      %v2574 = vpop.f32.mrb[0].mxu0
      %2575 = vmatprep.mubr.bf16.mxu0 0
      %2576 = vmatmul.mubr.bf16.gmra.mrb[0].mxu0 %v2481
      %v2577 = vpop.f32.mrb[0].mxu0
      %v2578 = vadd.f32 %v2463, %v2577
      %v2579 = vpop.f32.mrb[0].mxu0
      %v2580 = vpop.f32.mrb[0].mxu0
      %v2581 = vadd.f32 %v2463, %v2580
      %v2582 = vpop.f32.mrb[0].mxu0
      %2583 = vmatprep.mubr.bf16.mxu0 0
      %2584 = vmatmul.mubr.bf16.gmra.mrb[0].mxu0 %v2484
      %v2585 = vpop.f32.mrb[0].mxu0
      %v2586 = vadd.f32 %v2463, %v2585
      %v2587 = vpop.f32.mrb[0].mxu0
      %v2588 = vpop.f32.mrb[0].mxu0
      %v2589 = vadd.f32 %v2463, %v2588
      %v2590 = vpop.f32.mrb[0].mxu0
      %2591 = vmatprep.mubr.bf16.mxu0 0
      %2592 = vmatmul.mubr.bf16.gmra.mrb[0].mxu0 %v2487
      %v2593 = vpop.f32.mrb[0].mxu0
      %v2594 = vadd.f32 %v2463, %v2593
      %v2595 = vpop.f32.mrb[0].mxu0
      %v2596 = vpop.f32.mrb[0].mxu0
      %v2597 = vadd.f32 %v2463, %v2596
      %v2598 = vpop.f32.mrb[0].mxu0
      %2599 = vmatprep.mubr.bf16.mxu0 0
      %2600 = vmatmul.mubr.bf16.gmra.mrb[0].mxu0 %v2490
      %v2601 = vpop.f32.mrb[0].mxu0
      %v2602 = vadd.f32 %v2463, %v2601
      %v2603 = vpop.f32.mrb[0].mxu0
      %v2604 = vpop.f32.mrb[0].mxu0
      %v2605 = vadd.f32 %v2463, %v2604
      %v2606 = vpop.f32.mrb[0].mxu0
      %2607 = vmatprep.mubr.bf16.mxu0 0
      %2608 = vmatmul.mubr.bf16.gmra.mrb[0].mxu0 %v2493
      %v2609 = vpop.f32.mrb[0].mxu0
      %v2610 = vadd.f32 %v2463, %v2609
      %v2611 = vpop.f32.mrb[0].mxu0
      %v2612 = vpop.f32.mrb[0].mxu0
      %v2613 = vadd.f32 %v2463, %v2612
      %v2614 = vpop.f32.mrb[0].mxu0
      %2615 = vmatprep.mubr.bf16.mxu0 0
      %2616 = vmatmul.mubr.bf16.gmra.mrb[0].mxu0 %v2496
      %v2617 = vpop.f32.mrb[0].mxu0
      %v2618 = vadd.f32 %v2463, %v2617
      %v2619 = vpop.f32.mrb[0].mxu0
      %v2620 = vpop.f32.mrb[0].mxu0
      %v2621 = vadd.f32 %v2463, %v2620
      %v2622 = vpop.f32.mrb[0].mxu0
      %2623 = vmatprep.mubr.bf16.mxu0 0
      %2624 = vmatmul.mubr.bf16.gmra.mrb[0].mxu0 %v2499
      %v2625 = vpop.f32.mrb[0].mxu0
      %v2626 = vadd.f32 %v2463, %v2625
      %v2627 = vpop.f32.mrb[0].mxu0
      %v2628 = vpop.f32.mrb[0].mxu0
      %v2629 = vadd.f32 %v2463, %v2628
      %v2630 = vpop.f32.mrb[0].mxu0
      %2631 = vmatprep.mubr.bf16.mxu0 0
      %2632 = vmatmul.mubr.bf16.gmra.mrb[0].mxu0 %v2502
      %v2633 = vpop.f32.mrb[0].mxu0
      %v2634 = vadd.f32 %v2463, %v2633
      %v2635 = vpop.f32.mrb[0].mxu0
      %v2636 = vpop.f32.mrb[0].mxu0
      %v2637 = vadd.f32 %v2463, %v2636
      %v2638 = vpop.f32.mrb[0].mxu0
      %2639 = vmatprep.mubr.bf16.mxu0 0
      %2640 = vmatmul.mubr.bf16.gmra.mrb[0].mxu0 %v2505
      %v2641 = vpop.f32.mrb[0].mxu0
      %v2642 = vadd.f32 %v2463, %v2641
      %v2643 = vpop.f32.mrb[0].mxu0
      %v2644 = vpop.f32.mrb[0].mxu0
      %v2645 = vadd.f32 %v2463, %v2644
      %v2646 = vpop.f32.mrb[0].mxu0
      %2647 = vmatprep.mubr.bf16.mxu0 0
      %2648 = vmatmul.mubr.bf16.gmra.mrb[0].mxu0 %v2508
      %v2649 = vpop.f32.mrb[0].mxu0
      %v2650 = vadd.f32 %v2463, %v2649
      %v2651 = vpop.f32.mrb[0].mxu0
      %v2652 = vpop.f32.mrb[0].mxu0
      %v2653 = vadd.f32 %v2463, %v2652
      %v2654 = vpop.f32.mrb[0].mxu0
      %2655 = vmatprep.mubr.bf16.mxu0 0
      %2656 = vmatmul.mubr.bf16.gmra.mrb[0].mxu0 %v2511
      %v2657 = vpop.f32.mrb[0].mxu0
      %v2658 = vadd.f32 %v2463, %v2657
      %v2659 = vpop.f32.mrb[0].mxu0
      %v2660 = vpop.f32.mrb[0].mxu0
      %v2661 = vadd.f32 %v2463, %v2660
      %v2662 = vpop.f32.mrb[0].mxu0
      %2663 = vmatprep.mubr.bf16.mxu0 0
      %2664 = vmatmul.mubr.bf16.gmra.mrb[0].mxu0 %v2514
      %v2665 = vpop.f32.mrb[0].mxu0
      %v2666 = vadd.f32 %v2463, %v2665
      %v2667 = vpop.f32.mrb[0].mxu0
      %v2668 = vpop.f32.mrb[0].mxu0
      %v2669 = vadd.f32 %v2463, %v2668
      %v2670 = vpop.f32.mrb[0].mxu0
      %2671 = vmatprep.mubr.bf16.mxu0 0
      %2672 = vmatmul.mubr.bf16.gmra.mrb[0].mxu0 %v2517
      %v2673 = vpop.f32.mrb[0].mxu0
      %v2674 = vadd.f32 %v2463, %v2673
      %v2675 = vpop.f32.mrb[0].mxu0
      %v2676 = vpop.f32.mrb[0].mxu0
      %v2677 = vadd.f32 %v2463, %v2676
      %v2678 = vpop.f32.mrb[0].mxu0
      %2679 = vdwg.mxu0
      %v2680 = vmax.f32 %v2554, 0.0
      %v2681 = vmax.f32 %v2557, 0.0
      %v2682 = vmax.f32 %v2562, 0.0
      %v2683 = vmax.f32 %v2565, 0.0
      %v2684 = vmax.f32 %v2570, 0.0
      %v2685 = vmax.f32 %v2573, 0.0
      %v2686 = vmax.f32 %v2578, 0.0
      %v2687 = vmax.f32 %v2581, 0.0
      %v2688 = vmax.f32 %v2586, 0.0
      %v2689 = vmax.f32 %v2589, 0.0
      %v2690 = vmax.f32 %v2594, 0.0
      %v2691 = vmax.f32 %v2597, 0.0
      %v2692 = vmax.f32 %v2602, 0.0
      %v2693 = vmax.f32 %v2605, 0.0
      %v2694 = vmax.f32 %v2610, 0.0
      %v2695 = vmax.f32 %v2613, 0.0
      %v2696 = vmax.f32 %v2618, 0.0
      %v2697 = vmax.f32 %v2621, 0.0
      %v2698 = vmax.f32 %v2626, 0.0
      %v2699 = vmax.f32 %v2629, 0.0
      %v2700 = vmax.f32 %v2634, 0.0
      %v2701 = vmax.f32 %v2637, 0.0
      %v2702 = vmax.f32 %v2642, 0.0
      %v2703 = vmax.f32 %v2645, 0.0
      %v2704 = vmax.f32 %v2650, 0.0
      %v2705 = vmax.f32 %v2653, 0.0
      %v2706 = vmax.f32 %v2658, 0.0
      %v2707 = vmax.f32 %v2661, 0.0
      %v2708 = vmax.f32 %v2666, 0.0
      %v2709 = vmax.f32 %v2669, 0.0
      %v2710 = vmax.f32 %v2674, 0.0
      %v2711 = vmax.f32 %v2677, 0.0
      %v2712 = vpack.c.bf16 %v2681, %v2680
      %v2713 = vpack.c.bf16 %v2683, %v2682
      %v2714 = vpack.c.bf16 %v2685, %v2684
      %v2715 = vpack.c.bf16 %v2687, %v2686
      %v2716 = vpack.c.bf16 %v2689, %v2688
      %v2717 = vpack.c.bf16 %v2691, %v2690
      %v2718 = vpack.c.bf16 %v2693, %v2692
      %v2719 = vpack.c.bf16 %v2695, %v2694
      %v2720 = vpack.c.bf16 %v2697, %v2696
      %v2721 = vpack.c.bf16 %v2699, %v2698
      %v2722 = vpack.c.bf16 %v2701, %v2700
      %v2723 = vpack.c.bf16 %v2703, %v2702
      %v2724 = vpack.c.bf16 %v2705, %v2704
      %v2725 = vpack.c.bf16 %v2707, %v2706
      %v2726 = vpack.c.bf16 %v2709, %v2708
      %v2727 = vpack.c.bf16 %v2711, %v2710
      %v2728 = vld [vmem:[%s14] sm:$0xf]
      %v2729 = vld [vmem:[%s14 + $0x4] sm:$0xf]
      %v2730 = vld [vmem:[%s14 + $0x8] sm:$0xf]
      %v2731 = vld [vmem:[%s14 + $0xc] sm:$0xf]
      %v2732 = vld [vmem:[%s15] sm:$0x1]
      %v2734 = vlaneseq
      %v2735 = vshrl.u32 %v2734, 7
      %v2736 = vsub.s32 0, %v2735
      %v2737 = vrot.slane %v2732, %v2736
      %v2743 = vunpack.c.l.b16 %v2728
      %v2744 = vunpack.c.l.b16 %v2729
      %v2745 = vunpack.c.l.b16 %v2730
      %v2746 = vunpack.c.l.b16 %v2731
      %v2747 = vpack.c.b16 %v2744, %v2743
      %v2748 = vpack.c.b16 %v2746, %v2745
      %v2752 = vsel %vm914, %v2712, 0
      %v2755 = vsel %vm914, %v2713, 0
      %v2758 = vsel %vm914, %v2714, 0
      %v2761 = vsel %vm914, %v2715, 0
      %v2764 = vsel %vm914, %v2716, 0
      %v2767 = vsel %vm914, %v2717, 0
      %v2770 = vsel %vm914, %v2718, 0
      %v2773 = vsel %vm914, %v2719, 0
      %v2776 = vsel %vm914, %v2720, 0
      %v2779 = vsel %vm914, %v2721, 0
      %v2782 = vsel %vm914, %v2722, 0
      %v2785 = vsel %vm914, %v2723, 0
      %v2788 = vsel %vm914, %v2724, 0
      %v2791 = vsel %vm914, %v2725, 0
      %v2794 = vsel %vm914, %v2726, 0
      %v2797 = vsel %vm914, %v2727, 0
      %2799 = vmatprep.subr.bf16.mxu0 0
      %2800 = vmatpush1.bf16.msra.mxu0 %v2747
      %2801 = vmatprep.subr.bf16.mxu0 0
      %2802 = vmatpush1.bf16.msra.mxu0 %v2748
      %2803 = vmatprep.subr.bf16.mxu0 0
      %2804 = vmatpush1.bf16.msra.mxu0 0
      %2805 = vmatprep.subr.bf16.mxu0 0
      %2806 = vmatpush1.bf16.msra.mxu0 0
      %2807 = vmatprep.subr.bf16.mxu0 0
      %2808 = vmatpush1.bf16.msra.mxu0 0
      %2809 = vmatprep.subr.bf16.mxu0 0
      %2810 = vmatpush1.bf16.msra.mxu0 0
      %2811 = vmatprep.subr.bf16.mxu0 0
      %2812 = vmatpush1.bf16.msra.mxu0 0
      %2813 = vmatprep.subr.bf16.mxu0 0
      %2814 = vmatpush1.bf16.msra.mxu0 0
      %2815 = vmatprep.subr.bf16.mxu0 0
      %2816 = vmatpush1.bf16.msra.mxu0 0
      %2817 = vmatprep.subr.bf16.mxu0 0
      %2818 = vmatpush1.bf16.msra.mxu0 0
      %2819 = vmatprep.subr.bf16.mxu0 0
      %2820 = vmatpush1.bf16.msra.mxu0 0
      %2821 = vmatprep.subr.bf16.mxu0 0
      %2822 = vmatpush1.bf16.msra.mxu0 0
      %2823 = vmatprep.subr.bf16.mxu0 0
      %2824 = vmatpush1.bf16.msra.mxu0 0
      %2825 = vmatprep.subr.bf16.mxu0 0
      %2826 = vmatpush1.bf16.msra.mxu0 0
      %2827 = vmatprep.subr.bf16.mxu0 0
      %2828 = vmatpush1.bf16.msra.mxu0 0
      %2829 = vmatprep.subr.bf16.mxu0 0
      %2830 = vmatpush1.bf16.msra.mxu0 0
      %2831 = vmatprep.mubr.bf16.mxu0 0
      %2832 = vmatmul.mubr.bf16.gmra.mrb[0].mxu0 %v2752
      %v2833 = vpop.f32.mrb[0].mxu0
      %v2834 = vadd.f32 %v2737, %v2833
      %v2835 = vpop.f32.mrb[0].mxu0
      %v2836 = vpop.f32.mrb[0].mxu0
      %v2837 = vadd.f32 %v2737, %v2836
      %v2838 = vpop.f32.mrb[0].mxu0
      %2839 = vmatprep.mubr.bf16.mxu0 0
      %2840 = vmatmul.mubr.bf16.gmra.mrb[0].mxu0 %v2755
      %v2841 = vpop.f32.mrb[0].mxu0
      %v2842 = vadd.f32 %v2737, %v2841
      %v2843 = vpop.f32.mrb[0].mxu0
      %v2844 = vpop.f32.mrb[0].mxu0
      %v2845 = vadd.f32 %v2737, %v2844
      %v2846 = vpop.f32.mrb[0].mxu0
      %2847 = vmatprep.mubr.bf16.mxu0 0
      %2848 = vmatmul.mubr.bf16.gmra.mrb[0].mxu0 %v2758
      %v2849 = vpop.f32.mrb[0].mxu0
      %v2850 = vadd.f32 %v2737, %v2849
      %v2851 = vpop.f32.mrb[0].mxu0
      %v2852 = vpop.f32.mrb[0].mxu0
      %v2853 = vadd.f32 %v2737, %v2852
      %v2854 = vpop.f32.mrb[0].mxu0
      %2855 = vmatprep.mubr.bf16.mxu0 0
      %2856 = vmatmul.mubr.bf16.gmra.mrb[0].mxu0 %v2761
      %v2857 = vpop.f32.mrb[0].mxu0
      %v2858 = vadd.f32 %v2737, %v2857
      %v2859 = vpop.f32.mrb[0].mxu0
      %v2860 = vpop.f32.mrb[0].mxu0
      %v2861 = vadd.f32 %v2737, %v2860
      %v2862 = vpop.f32.mrb[0].mxu0
      %2863 = vmatprep.mubr.bf16.mxu0 0
      %2864 = vmatmul.mubr.bf16.gmra.mrb[0].mxu0 %v2764
      %v2865 = vpop.f32.mrb[0].mxu0
      %v2866 = vadd.f32 %v2737, %v2865
      %v2867 = vpop.f32.mrb[0].mxu0
      %v2868 = vpop.f32.mrb[0].mxu0
      %v2869 = vadd.f32 %v2737, %v2868
      %v2870 = vpop.f32.mrb[0].mxu0
      %2871 = vmatprep.mubr.bf16.mxu0 0
      %2872 = vmatmul.mubr.bf16.gmra.mrb[0].mxu0 %v2767
      %v2873 = vpop.f32.mrb[0].mxu0
      %v2874 = vadd.f32 %v2737, %v2873
      %v2875 = vpop.f32.mrb[0].mxu0
      %v2876 = vpop.f32.mrb[0].mxu0
      %v2877 = vadd.f32 %v2737, %v2876
      %v2878 = vpop.f32.mrb[0].mxu0
      %2879 = vmatprep.mubr.bf16.mxu0 0
      %2880 = vmatmul.mubr.bf16.gmra.mrb[0].mxu0 %v2770
      %v2881 = vpop.f32.mrb[0].mxu0
      %v2882 = vadd.f32 %v2737, %v2881
      %v2883 = vpop.f32.mrb[0].mxu0
      %v2884 = vpop.f32.mrb[0].mxu0
      %v2885 = vadd.f32 %v2737, %v2884
      %v2886 = vpop.f32.mrb[0].mxu0
      %2887 = vmatprep.mubr.bf16.mxu0 0
      %2888 = vmatmul.mubr.bf16.gmra.mrb[0].mxu0 %v2773
      %v2889 = vpop.f32.mrb[0].mxu0
      %v2890 = vadd.f32 %v2737, %v2889
      %v2891 = vpop.f32.mrb[0].mxu0
      %v2892 = vpop.f32.mrb[0].mxu0
      %v2893 = vadd.f32 %v2737, %v2892
      %v2894 = vpop.f32.mrb[0].mxu0
      %2895 = vmatprep.mubr.bf16.mxu0 0
      %2896 = vmatmul.mubr.bf16.gmra.mrb[0].mxu0 %v2776
      %v2897 = vpop.f32.mrb[0].mxu0
      %v2898 = vadd.f32 %v2737, %v2897
      %v2899 = vpop.f32.mrb[0].mxu0
      %v2900 = vpop.f32.mrb[0].mxu0
      %v2901 = vadd.f32 %v2737, %v2900
      %v2902 = vpop.f32.mrb[0].mxu0
      %2903 = vmatprep.mubr.bf16.mxu0 0
      %2904 = vmatmul.mubr.bf16.gmra.mrb[0].mxu0 %v2779
      %v2905 = vpop.f32.mrb[0].mxu0
      %v2906 = vadd.f32 %v2737, %v2905
      %v2907 = vpop.f32.mrb[0].mxu0
      %v2908 = vpop.f32.mrb[0].mxu0
      %v2909 = vadd.f32 %v2737, %v2908
      %v2910 = vpop.f32.mrb[0].mxu0
      %2911 = vmatprep.mubr.bf16.mxu0 0
      %2912 = vmatmul.mubr.bf16.gmra.mrb[0].mxu0 %v2782
      %v2913 = vpop.f32.mrb[0].mxu0
      %v2914 = vadd.f32 %v2737, %v2913
      %v2915 = vpop.f32.mrb[0].mxu0
      %v2916 = vpop.f32.mrb[0].mxu0
      %v2917 = vadd.f32 %v2737, %v2916
      %v2918 = vpop.f32.mrb[0].mxu0
      %2919 = vmatprep.mubr.bf16.mxu0 0
      %2920 = vmatmul.mubr.bf16.gmra.mrb[0].mxu0 %v2785
      %v2921 = vpop.f32.mrb[0].mxu0
      %v2922 = vadd.f32 %v2737, %v2921
      %v2923 = vpop.f32.mrb[0].mxu0
      %v2924 = vpop.f32.mrb[0].mxu0
      %v2925 = vadd.f32 %v2737, %v2924
      %v2926 = vpop.f32.mrb[0].mxu0
      %2927 = vmatprep.mubr.bf16.mxu0 0
      %2928 = vmatmul.mubr.bf16.gmra.mrb[0].mxu0 %v2788
      %v2929 = vpop.f32.mrb[0].mxu0
      %v2930 = vadd.f32 %v2737, %v2929
      %v2931 = vpop.f32.mrb[0].mxu0
      %v2932 = vpop.f32.mrb[0].mxu0
      %v2933 = vadd.f32 %v2737, %v2932
      %v2934 = vpop.f32.mrb[0].mxu0
      %2935 = vmatprep.mubr.bf16.mxu0 0
      %2936 = vmatmul.mubr.bf16.gmra.mrb[0].mxu0 %v2791
      %v2937 = vpop.f32.mrb[0].mxu0
      %v2938 = vadd.f32 %v2737, %v2937
      %v2939 = vpop.f32.mrb[0].mxu0
      %v2940 = vpop.f32.mrb[0].mxu0
      %v2941 = vadd.f32 %v2737, %v2940
      %v2942 = vpop.f32.mrb[0].mxu0
      %2943 = vmatprep.mubr.bf16.mxu0 0
      %2944 = vmatmul.mubr.bf16.gmra.mrb[0].mxu0 %v2794
      %v2945 = vpop.f32.mrb[0].mxu0
      %v2946 = vadd.f32 %v2737, %v2945
      %v2947 = vpop.f32.mrb[0].mxu0
      %v2948 = vpop.f32.mrb[0].mxu0
      %v2949 = vadd.f32 %v2737, %v2948
      %v2950 = vpop.f32.mrb[0].mxu0
      %2951 = vmatprep.mubr.bf16.mxu0 0
      %2952 = vmatmul.mubr.bf16.gmra.mrb[0].mxu0 %v2797
      %v2953 = vpop.f32.mrb[0].mxu0
      %v2954 = vadd.f32 %v2737, %v2953
      %v2955 = vpop.f32.mrb[0].mxu0
      %v2956 = vpop.f32.mrb[0].mxu0
      %v2957 = vadd.f32 %v2737, %v2956
      %v2958 = vpop.f32.mrb[0].mxu0
      %2959 = vdwg.mxu0
      %2960 = vst.msk [vmem:[%s567] sm:$0xff] %vm633, %v2834
      %2961 = vst.msk [vmem:[%s567 + $0x8] sm:$0xff] %vm633, %v2837
      %2962 = vst.msk [vmem:[%s567 + $0x10] sm:$0xff] %vm633, %v2842
      %2963 = vst.msk [vmem:[%s567 + $0x18] sm:$0xff] %vm633, %v2845
      %2964 = vst.msk [vmem:[%s567 + $0x20] sm:$0xff] %vm633, %v2850
      %2965 = vst.msk [vmem:[%s567 + $0x28] sm:$0xff] %vm633, %v2853
      %2966 = vst.msk [vmem:[%s567 + $0x30] sm:$0xff] %vm633, %v2858
      %2967 = vst.msk [vmem:[%s567 + $0x38] sm:$0xff] %vm633, %v2861
      %2968 = vst.msk [vmem:[%s567 + $0x40] sm:$0xff] %vm633, %v2866
      %2969 = vst.msk [vmem:[%s567 + $0x48] sm:$0xff] %vm633, %v2869
      %2970 = vst.msk [vmem:[%s567 + $0x50] sm:$0xff] %vm633, %v2874
      %2971 = vst.msk [vmem:[%s567 + $0x58] sm:$0xff] %vm633, %v2877
      %2972 = vst.msk [vmem:[%s567 + $0x60] sm:$0xff] %vm633, %v2882
      %2973 = vst.msk [vmem:[%s567 + $0x68] sm:$0xff] %vm633, %v2885
      %2974 = vst.msk [vmem:[%s567 + $0x70] sm:$0xff] %vm633, %v2890
      %2975 = vst.msk [vmem:[%s567 + $0x78] sm:$0xff] %vm633, %v2893
      %2976 = vst.msk [vmem:[%s567 + $0x80] sm:$0xff] %vm633, %v2898
      %2977 = vst.msk [vmem:[%s567 + $0x88] sm:$0xff] %vm633, %v2901
      %2978 = vst.msk [vmem:[%s567 + $0x90] sm:$0xff] %vm633, %v2906
      %2979 = vst.msk [vmem:[%s567 + $0x98] sm:$0xff] %vm633, %v2909
      %2980 = vst.msk [vmem:[%s567 + $0xa0] sm:$0xff] %vm633, %v2914
      %2981 = vst.msk [vmem:[%s567 + $0xa8] sm:$0xff] %vm633, %v2917
      %2982 = vst.msk [vmem:[%s567 + $0xb0] sm:$0xff] %vm633, %v2922
      %2983 = vst.msk [vmem:[%s567 + $0xb8] sm:$0xff] %vm633, %v2925
      %2984 = vst.msk [vmem:[%s567 + $0xc0] sm:$0xff] %vm633, %v2930
      %2985 = vst.msk [vmem:[%s567 + $0xc8] sm:$0xff] %vm633, %v2933
      %2986 = vst.msk [vmem:[%s567 + $0xd0] sm:$0xff] %vm633, %v2938
      %2987 = vst.msk [vmem:[%s567 + $0xd8] sm:$0xff] %vm633, %v2941
      %2988 = vst.msk [vmem:[%s567 + $0xe0] sm:$0xff] %vm633, %v2946
      %2989 = vst.msk [vmem:[%s567 + $0xe8] sm:$0xff] %vm633, %v2949
      %2990 = vst.msk [vmem:[%s567 + $0xf0] sm:$0xff] %vm633, %v2954
      %2991 = vst.msk [vmem:[%s567 + $0xf8] sm:$0xff] %vm633, %v2957
      %s2992 = smul.u32 32, %s27
      %p2993 = scmp.lt.s32.totalorder %s2992, 63
      %s2994 = scalar_select %p2993, %s2992, 63
      %s2995 = smul.addr %s2994, 8
      %s2996 = scalar_lea.vmem %s16, %s2995
      // Predicated region
      $region85: #{autoencoder_forward.1} parent=83 // pred_check
        %p2997 = pneg %p396
      $region86: #{autoencoder_forward.1} parent=83 // pred_check_branch
        %2999 = sbr.rel (%p2997) target = $region88
      $region87: #{autoencoder_forward.1} parent=83 // pred_region
        %s3000 = smul.u32 32, %s27
      $region88: #{autoencoder_forward.1} parent=83 // pred_fallthru
        _
    $region84: #{autoencoder_forward.1} parent=5 // pred_fallthru
      _
    %p3001 = scmp.le.s32.totalorder 2, %s22
    // Predicated region
    $region89: #{autoencoder_forward.1} parent=5 // pred_check
      %p3002 = pneg %p3001
    $region90: #{autoencoder_forward.1} parent=5 // pred_check_branch
      %3004 = sbr.rel (%p3002) target = $region92
    $region91: #{autoencoder_forward.1} parent=5 // pred_region
      %s3005 = ssub.s32 %s22, 2
      // Predicated region
      $region93: #{autoencoder_forward.1} parent=91 // pred_check
        %p3006 = pneg %p402
      $region94: #{autoencoder_forward.1} parent=91 // pred_check_branch
        %3008 = sbr.rel (%p3006) target = $region96
      $region95: #{autoencoder_forward.1} parent=91 // pred_region
        %s3009 = smul.u32 32, %s28
        %p3010 = scmp.lt.s32.totalorder %s3009, 63
        %s3011 = scalar_select %p3010, %s3009, 63
        %s3012 = smul.addr %s3011, 8
        %s3013 = scalar_lea.vmem %s16, %s3012
      $region96: #{autoencoder_forward.1} parent=91 // pred_fallthru
        _
    $region92: #{autoencoder_forward.1} parent=5 // pred_fallthru
      _
  $region6: #{autoencoder_forward.1} parent=0 // loop_footer
    %s26 = sadd.s32 1, %s22
  $region7: #{autoencoder_forward.1} parent=0 // loop_footer_branch
    %21 = sbr.rel target = $region3
  $region8: #{autoencoder_forward.1} parent=0 // loop_exit
    _

</llo_original>
